<compile_context>
chip_gen: v7x
topology: tpu7x:2x2x1
jax: 0.10.0
libtpu: 0.0.40
codegen_flags: <defaults>
</compile_context>

<pallas_src>
import math
import functools

import jax
import jax.numpy as jnp
from jax import lax
from jax.experimental import pallas as pl
from jax.experimental.pallas import tpu as pltpu


def _qkv_attn_kernel(q_ref, k_ref, v_ref, o_ref, m_ref, l_ref, acc_ref, *,
                     scale2, kv_mask_len, exp_in_bf16, matmul_in_bf16):
    """One (head-group, q-tile, kv-tile) flash step of legacy QKV attention.

    q_ref: (G, C, tq)   k_ref/v_ref: (G, C, tkv)   o_ref: (G, C, tq)
    scratch: m_ref/l_ref (G, 1, tq) f32, acc_ref (G, C, tq) f32
    """
    ki = pl.program_id(2)
    num_kv = pl.num_programs(2)
    G, _, tq = q_ref.shape
    tkv = k_ref.shape[-1]

    @pl.when(ki == 0)
    def _init():
        m_ref[...] = jnp.full(m_ref.shape, -jnp.inf, dtype=m_ref.dtype)
        l_ref[...] = jnp.zeros(l_ref.shape, dtype=l_ref.dtype)
        acc_ref[...] = jnp.zeros(acc_ref.shape, dtype=acc_ref.dtype)

    # kv-column validity mask: only materialized when the wrapper padded T.
    # It is head-independent, so it is computed once per grid step.
    if kv_mask_len is not None:
        kv_idx = ki * tkv + lax.broadcasted_iota(jnp.int32, (tkv, tq), 0)
        kv_valid = kv_idx < kv_mask_len
    else:
        kv_valid = None

    mm_dtype = jnp.bfloat16 if matmul_in_bf16 else q_ref.dtype

    def head_body(g, carry):
        # Fold the full softmax scale (1/sqrt(C)) into the small q tile:
        # C*tq multiplies instead of tkv*tq on the score tile.
        q = (q_ref[g].astype(jnp.float32) * scale2).astype(mm_dtype)   # (C, tq)
        k = k_ref[g].astype(mm_dtype)                                  # (C, tkv)
        v = v_ref[g].astype(mm_dtype)                                  # (C, tkv)

        # s[kv, t] = sum_c k[c, kv] * q[c, t]: transposed-LHS MXU matmul,
        # contraction over the channel (sublane) axis -> no XLU transpose.
        s = lax.dot_general(k, q, (((0,), (0,)), ((), ())),
                            preferred_element_type=jnp.float32)        # (tkv, tq)
        if kv_valid is not None:
            s = jnp.where(kv_valid, s, -jnp.inf)

        # Online softmax along kv (the sublane axis of s).
        m_prev = m_ref[g]                                              # (1, tq)
        m_new = jnp.maximum(m_prev, jnp.max(s, axis=0, keepdims=True))
        alpha = jnp.exp(m_prev - m_new)
        if exp_in_bf16:
            # bf16 EUP (v6e/v7x): ~2x throughput on the saturating exp slot.
            p = jnp.exp((s - m_new).astype(jnp.bfloat16))
        else:
            p = jnp.exp(s - m_new)

        l_ref[g] = alpha * l_ref[g] + jnp.sum(p.astype(jnp.float32), axis=0,
                                              keepdims=True)
        # a[c, t] += sum_kv v[c, kv] * p[kv, t]  (plain MXU matmul).
        pv = lax.dot_general(v, p.astype(mm_dtype), (((1,), (0,)), ((), ())),
                             preferred_element_type=jnp.float32)       # (C, tq)
        acc_ref[g] = alpha * acc_ref[g] + pv
        m_ref[g] = m_new
        return carry

    if G == 1:
        head_body(0, 0)
    else:
        # fori_loop (not a static Python unroll) bounds the live range of the
        # (tkv, tq) f32 score/prob tiles to one head at a time -> no spills.
        lax.fori_loop(0, G, head_body, 0)

    @pl.when(ki == num_kv - 1)
    def _finalize():
        inv_l = pl.reciprocal(l_ref[...], approx=True)     # EUP slot
        o_ref[...] = (acc_ref[...] * inv_l).astype(o_ref.dtype)


def _vmem_budget_bytes():
    """Generation-aware VMEM budget: <= 3/4 of physical, capped at 96 MiB
    (v5e/v6e have 128 MiB, v7x has 64 MiB -> 48 MiB)."""
    phys = 64 * 1024 * 1024  # conservative fallback (v7x per-core VMEM)
    try:
        info = pltpu.get_tpu_info()
        for attr in ("vmem_capacity_bytes", "vmem_bytes", "vmem_size_bytes"):
            v = getattr(info, attr, None)
            if v:
                phys = int(v)
                break
    except Exception:
        pass
    return min((phys * 3) // 4, 96 * 1024 * 1024)


def _bf16_eup_ok():
    """bf16 EUP/VPU exists on v6e/v7x but NOT on v5e and older."""
    try:
        kind = jax.devices()[0].device_kind.lower()
    except Exception:
        return False
    return ("v6" in kind) or ("v7" in kind)


def _pick_heads_per_block(B, ch):
    """Heads per grid step: amortize the ~0.35us/step overhead (target
    G*ch ~ 256, cap 8) while keeping >= 2 parallel head-groups for the v7x
    megacore split. Must divide B."""
    target = max(1, min(8, 256 // max(ch, 1)))
    if B >= 2:
        target = max(1, min(target, B // 2))
    for g in range(min(target, B), 0, -1):
        if B % g == 0:
            return g
    return 1


def _largest_aligned_tile(T, cap):
    """Largest multiple of 128 that divides T and is <= max(cap, 128).
    (T is guaranteed 128-aligned by the wrapper.)"""
    cap = max(128, (cap // 128) * 128)
    t = min(T, cap)
    while T % t != 0:
        t -= 128
    return t


def _pick_tiles(T, G, ch, itemsize, vmem_budget):
    """Start at the 512 cap (K/V are re-streamed once per q-tile, so bigger tq
    => less HBM traffic) and shrink tkv, then tq, until the pipelined working
    set fits in ~60% of the VMEM budget."""
    def footprint(tq, tkv):
        q_blk = G * ch * tq * itemsize
        kv_blk = G * ch * tkv * itemsize
        out_blk = G * ch * tq * itemsize
        io = 2 * (q_blk + 2 * kv_blk + out_blk)       # double-buffered DMAs
        acc = G * ch * tq * 4 + 2 * G * tq * 4        # acc + m + l scratch
        tmp = 3 * tkv * tq * 4                        # live s/p tiles (1 head)
        return io + acc + tmp

    tq = _largest_aligned_tile(T, 512)
    tkv = _largest_aligned_tile(T, 512)
    budget = int(vmem_budget * 0.6)
    while footprint(tq, tkv) > budget and tkv > 128:
        tkv = _largest_aligned_tile(T, tkv - 128)
    while footprint(tq, tkv) > budget and tq > 128:
        tq = _largest_aligned_tile(T, tq - 128)
    return tq, tkv


def qkv_attention_legacy(qkv: jax.Array, n_heads: int, *,
                         heads_per_block=None, q_tile=None, kv_tile=None,
                         matmul_in_bf16=False, exp_in_bf16=None,
                         kv_buffers=None) -> jax.Array:
    """qkv: [N, H * 3 * C, T]  ->  [N, H * C, T]  (QKVAttentionLegacy.forward)."""
    bs, width, length = qkv.shape
    assert width % (3 * n_heads) == 0
    ch = width // (3 * n_heads)
    B = bs * n_heads
    scale2 = 1.0 / math.sqrt(ch)     # == (1/sqrt(sqrt(ch)))**2

    # [bs, H*3*C, T] -> [bs*H, 3, C, T]: pure metadata reshape, no HBM rewrite.
    # q/k/v are addressed by the second axis (0/1/2) with full-extent channel
    # blocks, so no channel padding is needed for any C or dtype.
    qkv_h = qkv.reshape(B, 3, ch, length)

    # Flash tiling needs a lane-aligned T: pad only when required and mask the
    # padded kv columns to -inf in-kernel (padded q columns are sliced off).
    T_pad = length if length % 128 == 0 else ((length + 127) // 128) * 128
    if T_pad != length:
        qkv_h = jnp.pad(qkv_h, ((0, 0), (0, 0), (0, 0), (0, T_pad - length)))
    kv_mask_len = length if T_pad != length else None

    G = heads_per_block if heads_per_block is not None else _pick_heads_per_block(B, ch)
    assert B % G == 0, (B, G)

    vmem_budget = _vmem_budget_bytes()
    itemsize = jnp.dtype(qkv.dtype).itemsize
    tq, tkv = _pick_tiles(T_pad, G, ch, itemsize, vmem_budget)
    if q_tile is not None:
        tq = q_tile
    if kv_tile is not None:
        tkv = kv_tile
    assert T_pad % tq == 0 and T_pad % tkv == 0, (T_pad, tq, tkv)

    if exp_in_bf16 is None:
        exp_in_bf16 = (qkv.dtype == jnp.bfloat16) and _bf16_eup_ok()
    # bf16 MXU operands are only meaningful for f32 inputs (opt-in).
    matmul_in_bf16 = bool(matmul_in_bf16) and qkv.dtype != jnp.bfloat16

    grid = (B // G, T_pad // tq, T_pad // tkv)

    def _kv_spec(chan_block):
        kwargs = {}
        if kv_buffers is not None:
            kwargs["pipeline_mode"] = pl.Buffered(kv_buffers)
        return pl.BlockSpec((G, None, ch, tkv),
                            lambda b, qi, ki, _c=chan_block: (b, _c, 0, ki),
                            **kwargs)

    q_spec = pl.BlockSpec((G, None, ch, tq), lambda b, qi, ki: (b, 0, 0, qi))
    k_spec = _kv_spec(1)
    v_spec = _kv_spec(2)
    o_spec = pl.BlockSpec((G, ch, tq), lambda b, qi, ki: (b, 0, qi))

    out = pl.pallas_call(
        functools.partial(_qkv_attn_kernel, scale2=scale2,
                          kv_mask_len=kv_mask_len, exp_in_bf16=exp_in_bf16,
                          matmul_in_bf16=matmul_in_bf16),
        out_shape=jax.ShapeDtypeStruct((B, ch, T_pad), qkv.dtype),
        grid_spec=pltpu.PrefetchScalarGridSpec(
            num_scalar_prefetch=0,
            grid=grid,
            in_specs=[q_spec, k_spec, v_spec],
            out_specs=o_spec,
            scratch_shapes=[
                pltpu.VMEM((G, 1, tq), jnp.float32),    # running max m
                pltpu.VMEM((G, 1, tq), jnp.float32),    # running denom l
                pltpu.VMEM((G, ch, tq), jnp.float32),   # output accumulator
            ],
        ),
        compiler_params=pltpu.CompilerParams(
            dimension_semantics=("parallel", "parallel", "arbitrary"),
            vmem_limit_bytes=int(vmem_budget),
        ),
    )(qkv_h, qkv_h, qkv_h)   # same packed array; three BlockSpec views

    if T_pad != length:
        out = out[:, :, :length]
    return out.reshape(bs, n_heads * ch, length)


def _reference(qkv: jax.Array, n_heads: int) -> jax.Array:
    bs, width, length = qkv.shape
    ch = width // (3 * n_heads)
    qkv_h = qkv.reshape(bs * n_heads, 3 * ch, length)
    q, k, v = qkv_h[:, :ch], qkv_h[:, ch:2 * ch], qkv_h[:, 2 * ch:]
    scale = 1.0 / math.sqrt(math.sqrt(ch))
    w = jnp.einsum("bct,bcs->bts", q * scale, k * scale)
    w = jax.nn.softmax(w.astype(jnp.float32), axis=-1).astype(w.dtype)
    a = jnp.einsum("bts,bcs->bct", w, v)
    return a.reshape(bs, -1, length)


if __name__ == "__main__":
    key = jax.random.PRNGKey(0)

    # Case 1: aligned T, auto tiling (multi-head group + fori_loop head loop).
    n_heads, bs, ch, T = 4, 2, 8, 256
    qkv = jax.random.normal(key, (bs, n_heads * 3 * ch, T), dtype=jnp.float32)
    ref = _reference(qkv, n_heads)

    out = jax.block_until_ready(qkv_attention_legacy(qkv, n_heads))
    assert out.shape == ref.shape, (out.shape, ref.shape)
    assert jnp.allclose(out, ref, atol=1e-2, rtol=1e-2), "auto-tiled mismatch"

    # Case 2: explicit multi-tile flash path (several q/kv tiles, G=2).
    out2 = jax.block_until_ready(
        qkv_attention_legacy(qkv, n_heads, heads_per_block=2,
                             q_tile=128, kv_tile=128))
    assert jnp.allclose(out2, ref, atol=1e-2, rtol=1e-2), "tiled mismatch"

    # Case 3: opt-in bf16 MXU operands for f32 inputs (f32 accumulation kept).
    out3 = jax.block_until_ready(
        qkv_attention_legacy(qkv, n_heads, matmul_in_bf16=True))
    assert jnp.allclose(out3, ref, atol=5e-2, rtol=5e-2), "bf16-mxu mismatch"

    # Case 4: unaligned T and unaligned per-head C (padded + masked kv path).
    n_heads2, bs2, ch2, T2 = 2, 1, 6, 72
    qkv2 = jax.random.normal(jax.random.PRNGKey(1),
                             (bs2, n_heads2 * 3 * ch2, T2), dtype=jnp.float32)
    ref2 = _reference(qkv2, n_heads2)
    out4 = jax.block_until_ready(qkv_attention_legacy(qkv2, n_heads2))
    assert out4.shape == ref2.shape, (out4.shape, ref2.shape)
    assert jnp.allclose(out4, ref2, atol=1e-2, rtol=1e-2), "masked-path mismatch"

    print("KERNEL_OK")
</pallas_src>

<mosaic_0001>
module attributes {stable_mosaic.version = 11 : i64} {
  func.func @_qkv_attn_kernel(%arg0: i32, %arg1: i32, %arg2: i32, %arg3: memref<4x1x8x256xf32, #tpu.memory_space<vmem>>, %arg4: memref<4x1x8x256xf32, #tpu.memory_space<vmem>>, %arg5: memref<4x1x8x256xf32, #tpu.memory_space<vmem>>, %arg6: memref<4x8x256xf32, #tpu.memory_space<vmem>>, %arg7: memref<4x1x256xf32, #tpu.memory_space<vmem>>, %arg8: memref<4x1x256xf32, #tpu.memory_space<vmem>>, %arg9: memref<4x8x256xf32, #tpu.memory_space<vmem>>) attributes {dimension_semantics = [#tpu.dimension_semantics<parallel>, #tpu.dimension_semantics<parallel>, #tpu.dimension_semantics<arbitrary>], iteration_bounds = array<i64: 2, 1, 1>, scalar_prefetch = 0 : i64, scratch_operands = 3 : i64, tpu.core_type = #tpu.core_type<tc>, window_params = [{transform_indices = @transform_0, window_bounds = array<i64: 4, 1, 8, 256>}, {transform_indices = @transform_1, window_bounds = array<i64: 4, 1, 8, 256>}, {transform_indices = @transform_2, window_bounds = array<i64: 4, 1, 8, 256>}, {transform_indices = @transform_3, window_bounds = array<i64: 4, 8, 256>}]} {
    %c0_i32 = arith.constant 0 : i32
    %0 = arith.cmpi eq, %arg2, %c0_i32 : i32
    %1 = arith.extui %0 : i1 to i32
    %c0_i32_0 = arith.constant 0 : i32
    %2 = arith.cmpi ne, %1, %c0_i32_0 : i32
    scf.if %2 {
      %cst = arith.constant 0xFF800000 : f32
      %7 = vector.broadcast %cst : f32 to vector<4x1x256xf32>
      %c0 = arith.constant 0 : index
      %c0_5 = arith.constant 0 : index
      %c0_6 = arith.constant 0 : index
      %8 = vector.load %arg7[%c0, %c0_5, %c0_6] : memref<4x1x256xf32, #tpu.memory_space<vmem>>, vector<4x1x256xf32>
      tpu.vector_store %arg7[%c0, %c0_5, %c0_6], %7 {strides = array<i32>} : memref<4x1x256xf32, #tpu.memory_space<vmem>>, vector<4x1x256xf32>,
      %cst_7 = arith.constant 0.000000e+00 : f32
      %9 = vector.broadcast %cst_7 : f32 to vector<4x1x256xf32>
      %c0_8 = arith.constant 0 : index
      %c0_9 = arith.constant 0 : index
      %c0_10 = arith.constant 0 : index
      %10 = vector.load %arg8[%c0_8, %c0_9, %c0_10] : memref<4x1x256xf32, #tpu.memory_space<vmem>>, vector<4x1x256xf32>
      tpu.vector_store %arg8[%c0_8, %c0_9, %c0_10], %9 {strides = array<i32>} : memref<4x1x256xf32, #tpu.memory_space<vmem>>, vector<4x1x256xf32>,
      %cst_11 = arith.constant 0.000000e+00 : f32
      %11 = vector.broadcast %cst_11 : f32 to vector<4x8x256xf32>
      %c0_12 = arith.constant 0 : index
      %c0_13 = arith.constant 0 : index
      %c0_14 = arith.constant 0 : index
      %12 = vector.load %arg9[%c0_12, %c0_13, %c0_14] : memref<4x8x256xf32, #tpu.memory_space<vmem>>, vector<4x8x256xf32>
      tpu.vector_store %arg9[%c0_12, %c0_13, %c0_14], %11 {strides = array<i32>} : memref<4x8x256xf32, #tpu.memory_space<vmem>>, vector<4x8x256xf32>,
    } else {
    }
    %c0_i32_1 = arith.constant 0 : i32
    %c4_i32 = arith.constant 4 : i32
    %3 = arith.addi %c0_i32_1, %c4_i32 : i32
    %c1_i32 = arith.constant 1 : i32
    scf.for %arg10 = %c0_i32_1 to %3 step %c1_i32  : i32 {
      %7 = arith.index_cast %arg10 : i32 to index
      %c0 = arith.constant 0 : index
      %c0_5 = arith.constant 0 : index
      %c0_6 = arith.constant 0 : index
      %8 = vector.load %arg3[%7, %c0, %c0_5, %c0_6] : memref<4x1x8x256xf32, #tpu.memory_space<vmem>>, vector<1x1x8x256xf32>
      %9 = vector.shape_cast %8 : vector<1x1x8x256xf32> to vector<8x256xf32>
      %cst = arith.constant 0.353553385 : f32
      %10 = vector.broadcast %cst : f32 to vector<8x256xf32>
      %11 = arith.mulf %9, %10 : vector<8x256xf32>
      %12 = arith.index_cast %arg10 : i32 to index
      %c0_7 = arith.constant 0 : index
      %c0_8 = arith.constant 0 : index
      %c0_9 = arith.constant 0 : index
      %13 = vector.load %arg4[%12, %c0_7, %c0_8, %c0_9] : memref<4x1x8x256xf32, #tpu.memory_space<vmem>>, vector<1x1x8x256xf32>
      %14 = vector.shape_cast %13 : vector<1x1x8x256xf32> to vector<8x256xf32>
      %15 = arith.index_cast %arg10 : i32 to index
      %c0_10 = arith.constant 0 : index
      %c0_11 = arith.constant 0 : index
      %c0_12 = arith.constant 0 : index
      %16 = vector.load %arg5[%15, %c0_10, %c0_11, %c0_12] : memref<4x1x8x256xf32, #tpu.memory_space<vmem>>, vector<1x1x8x256xf32>
      %17 = vector.shape_cast %16 : vector<1x1x8x256xf32> to vector<8x256xf32>
      %cst_13 = arith.constant dense<0.000000e+00> : vector<256x256xf32>
      %18 = tpu.matmul %14, %11, %cst_13 {dimension_numbers = #tpu.dot_dimension_numbers<[0], [0], [1], [1], [0, 1, 1, 1], [], []>} : vector<8x256xf32>, vector<8x256xf32>, vector<256x256xf32> -> vector<256x256xf32>
      %19 = arith.index_cast %arg10 : i32 to index
      %c0_14 = arith.constant 0 : index
      %c0_15 = arith.constant 0 : index
      %20 = vector.load %arg7[%19, %c0_14, %c0_15] : memref<4x1x256xf32, #tpu.memory_space<vmem>>, vector<1x1x256xf32>
      %21 = vector.shape_cast %20 : vector<1x1x256xf32> to vector<1x256xf32>
      %cst_16 = arith.constant dense<0xFF800000> : vector<256xf32>
      %22 = vector.multi_reduction <maximumf>, %18, %cst_16 [0] : vector<256x256xf32> to vector<256xf32>
      %23 = vector.shape_cast %22 : vector<256xf32> to vector<1x256xf32>
      %24 = arith.maximumf %21, %23 : vector<1x256xf32>
      %25 = arith.subf %21, %24 : vector<1x256xf32>
      %26 = math.exp %25 : vector<1x256xf32>
      %27 = vector.broadcast %24 : vector<1x256xf32> to vector<256x256xf32>
      %28 = arith.subf %18, %27 : vector<256x256xf32>
      %29 = math.exp %28 : vector<256x256xf32>
      %30 = arith.index_cast %arg10 : i32 to index
      %c0_17 = arith.constant 0 : index
      %c0_18 = arith.constant 0 : index
      %31 = vector.load %arg8[%30, %c0_17, %c0_18] : memref<4x1x256xf32, #tpu.memory_space<vmem>>, vector<1x1x256xf32>
      %32 = vector.shape_cast %31 : vector<1x1x256xf32> to vector<1x256xf32>
      %33 = arith.mulf %26, %32 : vector<1x256xf32>
      %cst_19 = arith.constant dense<0.000000e+00> : vector<256xf32>
      %34 = vector.multi_reduction <add>, %29, %cst_19 [0] : vector<256x256xf32> to vector<256xf32>
      %35 = vector.shape_cast %34 : vector<256xf32> to vector<1x256xf32>
      %36 = arith.addf %33, %35 : vector<1x256xf32>
      %37 = arith.index_cast %arg10 : i32 to index
      %c0_20 = arith.constant 0 : index
      %c0_21 = arith.constant 0 : index
      %38 = vector.load %arg8[%37, %c0_20, %c0_21] : memref<4x1x256xf32, #tpu.memory_space<vmem>>, vector<1x1x256xf32>
      %39 = vector.shape_cast %38 : vector<1x1x256xf32> to vector<1x256xf32>
      %40 = vector.shape_cast %36 : vector<1x256xf32> to vector<1x1x256xf32>
      tpu.vector_store %arg8[%37, %c0_20, %c0_21], %40 {strides = array<i32>} : memref<4x1x256xf32, #tpu.memory_space<vmem>>, vector<1x1x256xf32>,
      %cst_22 = arith.constant dense<0.000000e+00> : vector<8x256xf32>
      %41 = tpu.matmul %17, %29, %cst_22 {dimension_numbers = #tpu.dot_dimension_numbers<[1], [0], [0], [1], [0, 0, 1, 1], [], []>} : vector<8x256xf32>, vector<256x256xf32>, vector<8x256xf32> -> vector<8x256xf32>
      %42 = arith.index_cast %arg10 : i32 to index
      %c0_23 = arith.constant 0 : index
      %c0_24 = arith.constant 0 : index
      %43 = vector.load %arg9[%42, %c0_23, %c0_24] : memref<4x8x256xf32, #tpu.memory_space<vmem>>, vector<1x8x256xf32>
      %44 = vector.shape_cast %43 : vector<1x8x256xf32> to vector<8x256xf32>
      %45 = vector.broadcast %26 : vector<1x256xf32> to vector<8x256xf32>
      %46 = arith.mulf %45, %44 : vector<8x256xf32>
      %47 = arith.addf %46, %41 : vector<8x256xf32>
      %48 = arith.index_cast %arg10 : i32 to index
      %c0_25 = arith.constant 0 : index
      %c0_26 = arith.constant 0 : index
      %49 = vector.load %arg9[%48, %c0_25, %c0_26] : memref<4x8x256xf32, #tpu.memory_space<vmem>>, vector<1x8x256xf32>
      %50 = vector.shape_cast %49 : vector<1x8x256xf32> to vector<8x256xf32>
      %51 = vector.shape_cast %47 : vector<8x256xf32> to vector<1x8x256xf32>
      tpu.vector_store %arg9[%48, %c0_25, %c0_26], %51 {strides = array<i32>} : memref<4x8x256xf32, #tpu.memory_space<vmem>>, vector<1x8x256xf32>,
      %52 = arith.index_cast %arg10 : i32 to index
      %c0_27 = arith.constant 0 : index
      %c0_28 = arith.constant 0 : index
      %53 = vector.load %arg7[%52, %c0_27, %c0_28] : memref<4x1x256xf32, #tpu.memory_space<vmem>>, vector<1x1x256xf32>
      %54 = vector.shape_cast %53 : vector<1x1x256xf32> to vector<1x256xf32>
      %55 = vector.shape_cast %24 : vector<1x256xf32> to vector<1x1x256xf32>
      tpu.vector_store %arg7[%52, %c0_27, %c0_28], %55 {strides = array<i32>} : memref<4x1x256xf32, #tpu.memory_space<vmem>>, vector<1x1x256xf32>,
    }
    %c4_i32_2 = arith.constant 4 : i32
    %c0_i32_3 = arith.constant 0 : i32
    %4 = arith.cmpi eq, %arg2, %c0_i32_3 : i32
    %5 = arith.extui %4 : i1 to i32
    %c0_i32_4 = arith.constant 0 : i32
    %6 = arith.cmpi ne, %5, %c0_i32_4 : i32
    scf.if %6 {
      %c0 = arith.constant 0 : index
      %c0_5 = arith.constant 0 : index
      %c0_6 = arith.constant 0 : index
      %7 = vector.load %arg8[%c0, %c0_5, %c0_6] : memref<4x1x256xf32, #tpu.memory_space<vmem>>, vector<4x1x256xf32>
      %8 = tpu.reciprocal %7 {approx = true} : vector<4x1x256xf32> -> vector<4x1x256xf32>
      %c0_7 = arith.constant 0 : index
      %c0_8 = arith.constant 0 : index
      %c0_9 = arith.constant 0 : index
      %9 = vector.load %arg9[%c0_7, %c0_8, %c0_9] : memref<4x8x256xf32, #tpu.memory_space<vmem>>, vector<4x8x256xf32>
      %10 = vector.broadcast %8 : vector<4x1x256xf32> to vector<4x8x256xf32>
      %11 = arith.mulf %9, %10 : vector<4x8x256xf32>
      %c0_10 = arith.constant 0 : index
      %c0_11 = arith.constant 0 : index
      %c0_12 = arith.constant 0 : index
      %12 = vector.load %arg6[%c0_10, %c0_11, %c0_12] : memref<4x8x256xf32, #tpu.memory_space<vmem>>, vector<4x8x256xf32>
      tpu.vector_store %arg6[%c0_10, %c0_11, %c0_12], %11 {strides = array<i32>} : memref<4x8x256xf32, #tpu.memory_space<vmem>>, vector<4x8x256xf32>,
    } else {
    }
    return
  }
  func.func @transform_0(%arg0: i32, %arg1: i32, %arg2: i32) -> (i32, i32, i32, i32) {
    %c0_i32 = arith.constant 0 : i32
    %c0_i32_0 = arith.constant 0 : i32
    %c0_i32_1 = arith.constant 0 : i32
    return %arg0, %c0_i32, %c0_i32_0, %arg1 : i32, i32, i32, i32
  }
  func.func @transform_1(%arg0: i32, %arg1: i32, %arg2: i32) -> (i32, i32, i32, i32) {
    %c1_i32 = arith.constant 1 : i32
    %c0_i32 = arith.constant 0 : i32
    %c0_i32_0 = arith.constant 0 : i32
    return %arg0, %c1_i32, %c0_i32, %arg2 : i32, i32, i32, i32
  }
  func.func @transform_2(%arg0: i32, %arg1: i32, %arg2: i32) -> (i32, i32, i32, i32) {
    %c2_i32 = arith.constant 2 : i32
    %c0_i32 = arith.constant 0 : i32
    %c0_i32_0 = arith.constant 0 : i32
    return %arg0, %c2_i32, %c0_i32, %arg2 : i32, i32, i32, i32
  }
  func.func @transform_3(%arg0: i32, %arg1: i32, %arg2: i32) -> (i32, i32, i32) {
    %c0_i32 = arith.constant 0 : i32
    %c0_i32_0 = arith.constant 0 : i32
    return %arg0, %c0_i32, %arg1 : i32, i32, i32
  }
}

</mosaic_0001>

<llo_original>
// kernel: tpu_custom_call.1
$region0: #{tpu_custom_call.1}
  #allocation0 [shape = 'u32[]', space=smem, size = 0x4, offset = 0x4, fixed_abs, tag = 'smem constant byte address 0x4 - core index']
  #allocation1 [shape = 'u32[144,128]{1,0:T(1,128)}', space=vmem, size = 0x12000, scoped, tag = 'internal scratch']
  #allocation2 [shape = 'f32[4,1,256]{2,1,0:T(1,128)}', space=vmem, size = 0x1000, scoped, tag = 'scratch operand']
  #allocation3 [shape = 'f32[4,1,256]{2,1,0:T(1,128)}', space=vmem, size = 0x1000, scoped, tag = 'scratch operand']
  #allocation4 [shape = 'f32[4,8,256]{2,1,0:T(8,128)}', space=vmem, size = 0x8000, scoped, tag = 'scratch operand']
  %s0 = inlined_call_operand.hbm [shape: f32[8,3,8,256], index: 0, kind: input, shape index: {}]
  %s1 = inlined_call_operand.hbm [shape: f32[8,3,8,256], index: 1, kind: input, shape index: {}]
  %s2 = inlined_call_operand.hbm [shape: f32[8,3,8,256], index: 2, kind: input, shape index: {}]
  %s3 = inlined_call_operand.hbm [shape: f32[8,8,256], index: 3, kind: output, shape index: {}]
  %s4 = sld [smem:[#allocation0]]
  $region72: #{tpu_custom_call.1} parent=0
    _
  %s6 = ssub.s32 1, %s4
  %s7 = scalar_select 0, %s6, %s4
  $region1: #{tpu_custom_call.1} parent=0
    #allocation5 [shape = 'u8[65536]{0}', space=vmem, size = 0x10000, scoped, tag = 'input window, operand 0']
    #allocation6 [shape = 's32[2]{0}', space=sflag, size = 0x8, scoped, tag = 'scoped memory for tpu_custom_call.1']
    #allocation7 [shape = 's32[2]{0}', space=sflag, size = 0x8, scoped, tag = 'scoped memory for tpu_custom_call.1']
    #allocation8 [shape = 'u8[65536]{0}', space=vmem, size = 0x10000, scoped, tag = 'input window, operand 1']
    #allocation9 [shape = 's32[2]{0}', space=sflag, size = 0x8, scoped, tag = 'scoped memory for tpu_custom_call.1']
    #allocation10 [shape = 'u8[65536]{0}', space=vmem, size = 0x10000, scoped, tag = 'input window, operand 2']
    #allocation11 [shape = 'u8[65536]{0}', space=vmem, size = 0x10000, scoped, tag = 'output window, operand 0']
    %8 = vsyncpa [#allocation6], 0
    %s9 = scalar_lea.sflag [#allocation6], 1
    %10 = vsyncpa %s9, 0
    %11 = vsyncpa [#allocation9], 0
    %s12 = scalar_lea.sflag [#allocation9], 1
    %13 = vsyncpa %s12, 0
    %14 = vsyncpa [#allocation7], 0
    %s15 = scalar_lea.sflag [#allocation7], 1
    %16 = vsyncpa %s15, 0
    loop: start=0, step=1, limit=4
    $region2: #{tpu_custom_call.1} parent=1 // loop_pre_header
      _
    $region3: #{tpu_custom_call.1} parent=1 // loop_header
      %s18 = sphi 0, %s22
      %p19 = scmp.ge.s32.totalorder %s18, 4
      %s25 = sphi 0, %s44
      %s26 = sphi 0, %s40
      %s27 = sphi 0, %s36
      %s28 = sphi 0, %s25
      %s29 = sphi 0, %s26
      %s30 = sphi 0, %s27
      %s31 = sphi 0, %s28
      %s32 = sphi 0, %s29
      %s33 = sphi 0, %s30
      %s49 = sphi 0, %s51
      %s52 = sphi 0, %s49
      %s53 = sphi 0, %s52
      %s69 = sphi 0, %s53
      %s77 = sphi 0, %s79
      %s80 = sphi 0, %s77
      %s81 = sphi 0, %s80
      %s97 = sphi 0, %s81
      %s105 = sphi 0, %s107
      %s108 = sphi 0, %s105
      %s109 = sphi 0, %s108
      %s125 = sphi 0, %s109
      %s133 = sphi 0, %s135
      %s136 = sphi 0, %s133
      %s137 = sphi 0, %s136
      %s153 = sphi 0, %s137
    $region4: #{tpu_custom_call.1} parent=1 // loop_header_branch
      %21 = sbr.rel (%p19) target = $region8
    $region5: #{tpu_custom_call.1} parent=1 // loop_body
      %s23 = ssub.s32 %s18, 1
      %s24 = ssub.s32 %s18, 2
      %s34 = sadd.s32 1, %s27
      %p35 = scmp.ge.s32.totalorder %s34, 1
      %s36 = scalar_select %p35, 0, %s34
      %s37 = sadd.s32 1, %s26
      %s38 = scalar_select %p35, %s37, %s26
      %p39 = scmp.ge.s32.totalorder %s38, 1
      %s40 = scalar_select %p39, 0, %s38
      %s41 = sadd.s32 1, %s25
      %s42 = scalar_select %p39, %s41, %s25
      %p43 = scmp.ge.s32.totalorder %s42, 2
      %s44 = scalar_select %p43, 0, %s42
      %s45 = ssub.s32 %s25, %s44
      %s46 = ssub.s32 %s26, %s40
      %s47 = sor.u32 %s45, %s46
      %p48 = scmp.eq.s32.totalorder %s47, 0
      %s50 = sadd.s32 %s49, 1
      %s51 = scalar_select %p48, %s49, %s50
      %p54 = pneg %p48
      %p55 = scmp.eq.s32.totalorder %s18, 1
      %p56 = por %p54, %p55
      %p57 = scmp.ne.s32.totalorder %s49, %s52
      %p58 = scmp.eq.s32.totalorder %s18, 0
      %p59 = por %p57, %p58
      %p60 = scmp.ne.s32.totalorder %s49, %s52
      %p61 = scmp.eq.s32.totalorder %s23, 1
      %p62 = por %p60, %p61
      %p63 = scmp.ne.s32.totalorder %s52, %s53
      %p64 = scmp.eq.s32.totalorder %s23, 0
      %p65 = por %p63, %p64
      %p66 = scmp.ne.s32.totalorder %s52, %s53
      %p67 = scmp.eq.s32.totalorder %s24, 1
      %p68 = por %p66, %p67
      %p70 = scmp.ne.s32.totalorder %s53, %s69
      %p71 = scmp.eq.s32.totalorder %s24, 0
      %p72 = por %p70, %p71
      %s73 = ssub.s32 %s25, %s44
      %s74 = ssub.s32 %s27, %s36
      %s75 = sor.u32 %s73, %s74
      %p76 = scmp.eq.s32.totalorder %s75, 0
      %s78 = sadd.s32 %s77, 1
      %s79 = scalar_select %p76, %s77, %s78
      %p82 = pneg %p76
      %p83 = scmp.eq.s32.totalorder %s18, 1
      %p84 = por %p82, %p83
      %p85 = scmp.ne.s32.totalorder %s77, %s80
      %p86 = scmp.eq.s32.totalorder %s18, 0
      %p87 = por %p85, %p86
      %p88 = scmp.ne.s32.totalorder %s77, %s80
      %p89 = scmp.eq.s32.totalorder %s23, 1
      %p90 = por %p88, %p89
      %p91 = scmp.ne.s32.totalorder %s80, %s81
      %p92 = scmp.eq.s32.totalorder %s23, 0
      %p93 = por %p91, %p92
      %p94 = scmp.ne.s32.totalorder %s80, %s81
      %p95 = scmp.eq.s32.totalorder %s24, 1
      %p96 = por %p94, %p95
      %p98 = scmp.ne.s32.totalorder %s81, %s97
      %p99 = scmp.eq.s32.totalorder %s24, 0
      %p100 = por %p98, %p99
      %s101 = ssub.s32 %s25, %s44
      %s102 = ssub.s32 %s27, %s36
      %s103 = sor.u32 %s101, %s102
      %p104 = scmp.eq.s32.totalorder %s103, 0
      %s106 = sadd.s32 %s105, 1
      %s107 = scalar_select %p104, %s105, %s106
      %p110 = pneg %p104
      %p111 = scmp.eq.s32.totalorder %s18, 1
      %p112 = por %p110, %p111
      %p113 = scmp.ne.s32.totalorder %s105, %s108
      %p114 = scmp.eq.s32.totalorder %s18, 0
      %p115 = por %p113, %p114
      %p116 = scmp.ne.s32.totalorder %s105, %s108
      %p117 = scmp.eq.s32.totalorder %s23, 1
      %p118 = por %p116, %p117
      %p119 = scmp.ne.s32.totalorder %s108, %s109
      %p120 = scmp.eq.s32.totalorder %s23, 0
      %p121 = por %p119, %p120
      %p122 = scmp.ne.s32.totalorder %s108, %s109
      %p123 = scmp.eq.s32.totalorder %s24, 1
      %p124 = por %p122, %p123
      %p126 = scmp.ne.s32.totalorder %s109, %s125
      %p127 = scmp.eq.s32.totalorder %s24, 0
      %p128 = por %p126, %p127
      %s129 = ssub.s32 %s25, %s44
      %s130 = ssub.s32 %s26, %s40
      %s131 = sor.u32 %s129, %s130
      %p132 = scmp.eq.s32.totalorder %s131, 0
      %s134 = sadd.s32 %s133, 1
      %s135 = scalar_select %p132, %s133, %s134
      %p138 = pneg %p132
      %p139 = scmp.eq.s32.totalorder %s18, 1
      %p140 = por %p138, %p139
      %p141 = scmp.ne.s32.totalorder %s133, %s136
      %p142 = scmp.eq.s32.totalorder %s18, 0
      %p143 = por %p141, %p142
      %p144 = scmp.ne.s32.totalorder %s133, %s136
      %p145 = scmp.eq.s32.totalorder %s23, 1
      %p146 = por %p144, %p145
      %p147 = scmp.ne.s32.totalorder %s136, %s137
      %p148 = scmp.eq.s32.totalorder %s23, 0
      %p149 = por %p147, %p148
      %p150 = scmp.ne.s32.totalorder %s136, %s137
      %p151 = scmp.eq.s32.totalorder %s24, 1
      %p152 = por %p150, %p151
      %p154 = scmp.ne.s32.totalorder %s137, %s153
      %p155 = scmp.eq.s32.totalorder %s24, 0
      %p156 = por %p154, %p155
      %p157 = scmp.le.s32.totalorder 1, %s18
      %p158 = scmp.lt.s32.totalorder %s18, 3
      %p159 = pnand %p157, %p158
      %p160 = pneg %p159
      // Predicated region
      $region9: #{tpu_custom_call.1} parent=5 // pred_check
        _
      $region10: #{tpu_custom_call.1} parent=5 // pred_check_branch
        %162 = sbr.rel (%p159) target = $region12
      $region11: #{tpu_custom_call.1} parent=5 // pred_region
        %s163 = ssub.s32 %s18, 1
      $region12: #{tpu_custom_call.1} parent=5 // pred_fallthru
        _
      %p164 = scmp.lt.s32.totalorder %s18, 2
      // Predicated region
      $region13: #{tpu_custom_call.1} parent=5 // pred_check
        %p165 = pneg %p164
      $region14: #{tpu_custom_call.1} parent=5 // pred_check_branch
        %167 = sbr.rel (%p165) target = $region16
      $region15: #{tpu_custom_call.1} parent=5 // pred_region
        // Predicated region
        $region17: #{tpu_custom_call.1} parent=15 // pred_check
          %p168 = pneg %p59
        $region18: #{tpu_custom_call.1} parent=15 // pred_check_branch
          %170 = sbr.rel (%p168) target = $region20
        $region19: #{tpu_custom_call.1} parent=15 // pred_region
          %s171 = sand.u32 %s49, 1
          %s172 = scalar_lea.sflag [#allocation6], %s171
          %s173 = sand.u32 %s49, 1
          %s174 = smul.addr %s173, 64
          %s175 = scalar_lea.vmem [#allocation5], %s174
          %s176 = smul.u32 4, %s25
          %s177 = smul.u32 2, %s26
          %s179 = ssub.s32 1024, 1024
          %180 = vsyncadd %s172, %s179
          %s181 = smul.addr %s176, 6
          %s182 = sadd.s32 %s177, %s181
          %s183 = smul.addr %s182, 128
          %s184 = scalar_lea.hbm %s0, %s183
          %s185 = sshll.u32 %s175, 4
          %s186 = int_to_ptr.vmem [resolvable:$true] %s185
          %191 = dma.hbm_to_vmem [thread:$0]  %s184, 1024, %s186, %s172, 768, 256, 16
        $region20: #{tpu_custom_call.1} parent=15 // pred_fallthru
          _
        // Predicated region
        $region21: #{tpu_custom_call.1} parent=15 // pred_check
          %p192 = pneg %p87
        $region22: #{tpu_custom_call.1} parent=15 // pred_check_branch
          %194 = sbr.rel (%p192) target = $region24
        $region23: #{tpu_custom_call.1} parent=15 // pred_region
          %s195 = sand.u32 %s18, 1
          %s196 = scalar_lea.sflag [#allocation9], %s195
          %s197 = sand.u32 %s77, 1
          %s198 = smul.addr %s197, 64
          %s199 = scalar_lea.vmem [#allocation8], %s198
          %s200 = smul.u32 4, %s25
          %s201 = smul.u32 2, %s27
          %s203 = ssub.s32 1024, 1024
          %204 = vsyncadd %s196, %s203
          %s205 = sadd.s32 %s201, 2
          %s206 = smul.addr %s200, 6
          %s207 = sadd.s32 %s205, %s206
          %s208 = smul.addr %s207, 128
          %s209 = scalar_lea.hbm %s1, %s208
          %s210 = sshll.u32 %s199, 4
          %s211 = int_to_ptr.vmem [resolvable:$true] %s210
          %216 = dma.hbm_to_vmem [thread:$0]  %s209, 1024, %s211, %s196, 768, 256, 16
        $region24: #{tpu_custom_call.1} parent=15 // pred_fallthru
          _
        // Predicated region
        $region25: #{tpu_custom_call.1} parent=15 // pred_check
          %p217 = pneg %p115
        $region26: #{tpu_custom_call.1} parent=15 // pred_check_branch
          %219 = sbr.rel (%p217) target = $region28
        $region27: #{tpu_custom_call.1} parent=15 // pred_region
          %s220 = sand.u32 %s18, 1
          %s221 = scalar_lea.sflag [#allocation9], %s220
          %s222 = sand.u32 %s105, 1
          %s223 = smul.addr %s222, 64
          %s224 = scalar_lea.vmem [#allocation10], %s223
          %s225 = smul.u32 4, %s25
          %s226 = smul.u32 2, %s27
          %s228 = ssub.s32 1024, 1024
          %229 = vsyncadd %s221, %s228
          %s230 = sadd.s32 %s226, 4
          %s231 = smul.addr %s225, 6
          %s232 = sadd.s32 %s230, %s231
          %s233 = smul.addr %s232, 128
          %s234 = scalar_lea.hbm %s2, %s233
          %s235 = sshll.u32 %s224, 4
          %s236 = int_to_ptr.vmem [resolvable:$true] %s235
          %241 = dma.hbm_to_vmem [thread:$0]  %s234, 1024, %s236, %s221, 768, 256, 16
        $region28: #{tpu_custom_call.1} parent=15 // pred_fallthru
          _
      $region16: #{tpu_custom_call.1} parent=5 // pred_fallthru
        _
      %p242 = scmp.le.s32.totalorder 1, %s18
      %p243 = scmp.lt.s32.totalorder %s18, 3
      %p244 = pnand %p242, %p243
      %p245 = pneg %p244
      // Predicated region
      $region29: #{tpu_custom_call.1} parent=5 // pred_check
        _
      $region30: #{tpu_custom_call.1} parent=5 // pred_check_branch
        %247 = sbr.rel (%p244) target = $region32
      $region31: #{tpu_custom_call.1} parent=5 // pred_region
        %s248 = ssub.s32 %s18, 1
        %s249 = sand.u32 %s52, 1
        %s250 = scalar_lea.sflag [#allocation6], %s249
        %s251 = sand.u32 %s52, 1
        %s252 = smul.addr %s251, 64
        %s253 = scalar_lea.vmem [#allocation5], %s252
        // Predicated region
        $region33: #{tpu_custom_call.1} parent=31 // pred_check
          %p254 = pneg %p65
        $region34: #{tpu_custom_call.1} parent=31 // pred_check_branch
          %256 = sbr.rel (%p254) target = $region36
        $region35: #{tpu_custom_call.1} parent=31 // pred_region
          %257 = dma.done %s250, 1024
        $region36: #{tpu_custom_call.1} parent=31 // pred_fallthru
          _
        %s258 = sand.u32 %s23, 1
        %s259 = scalar_lea.sflag [#allocation9], %s258
        %s260 = sand.u32 %s80, 1
        %s261 = smul.addr %s260, 64
        %s262 = scalar_lea.vmem [#allocation8], %s261
        // Predicated region
        $region37: #{tpu_custom_call.1} parent=31 // pred_check
          %p263 = pneg %p93
        $region38: #{tpu_custom_call.1} parent=31 // pred_check_branch
          %265 = sbr.rel (%p263) target = $region40
        $region39: #{tpu_custom_call.1} parent=31 // pred_region
          %266 = dma.done %s259, 1024
        $region40: #{tpu_custom_call.1} parent=31 // pred_fallthru
          _
        %s267 = sand.u32 %s23, 1
        %s268 = scalar_lea.sflag [#allocation9], %s267
        %s269 = sand.u32 %s108, 1
        %s270 = smul.addr %s269, 64
        %s271 = scalar_lea.vmem [#allocation10], %s270
        // Predicated region
        $region41: #{tpu_custom_call.1} parent=31 // pred_check
          %p272 = pneg %p121
        $region42: #{tpu_custom_call.1} parent=31 // pred_check_branch
          %274 = sbr.rel (%p272) target = $region44
        $region43: #{tpu_custom_call.1} parent=31 // pred_region
          %275 = dma.done %s268, 1024
        $region44: #{tpu_custom_call.1} parent=31 // pred_fallthru
          _
        %s276 = sand.u32 %s52, 1
        %s277 = scalar_lea.sflag [#allocation6], %s276
        %s278 = sand.u32 %s52, 1
        %s279 = smul.addr %s278, 64
        %s280 = scalar_lea.vmem [#allocation5], %s279
        %p281 = pneg %p65
        %p282 = pneg %p62
        %s283 = sand.u32 %s23, 1
        %s284 = scalar_lea.sflag [#allocation9], %s283
        %s285 = sand.u32 %s80, 1
        %s286 = smul.addr %s285, 64
        %s287 = scalar_lea.vmem [#allocation8], %s286
        %p288 = pneg %p93
        %p289 = pneg %p90
        %s290 = sand.u32 %s23, 1
        %s291 = scalar_lea.sflag [#allocation9], %s290
        %s292 = sand.u32 %s108, 1
        %s293 = smul.addr %s292, 64
        %s294 = scalar_lea.vmem [#allocation10], %s293
        %p295 = pneg %p121
        %p296 = pneg %p118
        %p297 = pneg %p149
        %p298 = pneg %p146
        %s299 = sand.u32 %s136, 1
        %s300 = scalar_lea.sflag [#allocation7], %s299
        %s301 = sand.u32 %s136, 1
        %s302 = smul.addr %s301, 64
        %s303 = scalar_lea.vmem [#allocation11], %s302
        %s304 = smul.u32 4, %s28
        %s305 = smul.u32 2, %s29
        %s306 = smul.u32 4, %s28
        %s307 = smul.u32 2, %s30
        %s308 = smul.u32 4, %s28
        %s309 = smul.u32 2, %s30
        %s310 = smul.u32 4, %s28
        %s311 = smul.u32 2, %s29
        %p312 = scmp.eq.s32.totalorder %s30, 0
        // Predicated region
        $region45: #{tpu_custom_call.1} parent=31 // pred_check
          %p313 = pneg %p312
        $region46: #{tpu_custom_call.1} parent=31 // pred_check_branch
          %315 = sbr.rel (%p313) target = $region48
        $region47: #{tpu_custom_call.1} parent=31 // pred_region
          %v316 = vlaneseq
          %vm317 = vcmp.ge.s32.totalorder %v316, 0
          %vm318 = vcmp.lt.s32.totalorder %v316, 256
          %vm319 = vmand %vm317, %vm318
          %320 = vst.msk [vmem:[#allocation2] sm:$0x3] %vm319, -inf
          %321 = vst.msk [vmem:[#allocation2 + $0x2] sm:$0x3] %vm319, -inf
          %322 = vst.msk [vmem:[#allocation2 + $0x4] sm:$0x3] %vm319, -inf
          %323 = vst.msk [vmem:[#allocation2 + $0x6] sm:$0x3] %vm319, -inf
          %324 = vst.msk [vmem:[#allocation3] sm:$0x3] %vm319, 0.0
          %325 = vst.msk [vmem:[#allocation3 + $0x2] sm:$0x3] %vm319, 0.0
          %326 = vst.msk [vmem:[#allocation3 + $0x4] sm:$0x3] %vm319, 0.0
          %327 = vst.msk [vmem:[#allocation3 + $0x6] sm:$0x3] %vm319, 0.0
          %328 = vst [vmem:[#allocation4] sm:$0xff] 0.0
          %329 = vst [vmem:[#allocation4 + $0x8] sm:$0xff] 0.0
          %330 = vst [vmem:[#allocation4 + $0x10] sm:$0xff] 0.0
          %331 = vst [vmem:[#allocation4 + $0x18] sm:$0xff] 0.0
          %332 = vst [vmem:[#allocation4 + $0x20] sm:$0xff] 0.0
          %333 = vst [vmem:[#allocation4 + $0x28] sm:$0xff] 0.0
          %334 = vst [vmem:[#allocation4 + $0x30] sm:$0xff] 0.0
          %335 = vst [vmem:[#allocation4 + $0x38] sm:$0xff] 0.0
        $region48: #{tpu_custom_call.1} parent=31 // pred_fallthru
          _
        loop: start=0, step=1, limit=4
        $region49: #{tpu_custom_call.1} parent=31 // loop_pre_header
          _
        $region50: #{tpu_custom_call.1} parent=31 // loop_header
          %s337 = sphi 0, %s341
          %p338 = scmp.ge.s32.totalorder %s337, 4
        $region51: #{tpu_custom_call.1} parent=31 // loop_header_branch
          %340 = sbr.rel (%p338) target = $region55
        $region52: #{tpu_custom_call.1} parent=31 // loop_body
          %s342 = smul.u32 %s337, 2
          %s343 = smul.addr %s342, 8
          %s344 = scalar_lea.vmem %s253, %s343 [#allocation5]
          %v345 = vld [vmem:[%s344] sm:$0xff]
          %v346 = vld [vmem:[%s344 + $0x8] sm:$0xff]
          %v347 = vmul.f32 %v345, 0.35355338
          %v348 = vmul.f32 %v346, 0.35355338
          %s349 = smul.addr %s342, 8
          %s350 = scalar_lea.vmem %s262, %s349 [#allocation8]
          %v351 = vld [vmem:[%s350] sm:$0xff]
          %v352 = vld [vmem:[%s350 + $0x8] sm:$0xff]
          %s353 = smul.addr %s342, 8
          %s354 = scalar_lea.vmem %s271, %s353 [#allocation10]
          %v355 = vld [vmem:[%s354] sm:$0xff]
          %v356 = vld [vmem:[%s354 + $0x8] sm:$0xff]
          %357 = vxpose.xlu0.b32.start [1/16] %v351, 128
          %358 = vxpose.xlu0.b32.cont [2/16] 0.0, 128
          %359 = vxpose.xlu0.b32.cont [3/16] 0.0, 128
          %360 = vxpose.xlu0.b32.cont [4/16] 0.0, 128
          %361 = vxpose.xlu0.b32.cont [5/16] 0.0, 128
          %362 = vxpose.xlu0.b32.cont [6/16] 0.0, 128
          %363 = vxpose.xlu0.b32.cont [7/16] 0.0, 128
          %364 = vxpose.xlu0.b32.cont [8/16] 0.0, 128
          %365 = vxpose.xlu0.b32.cont [9/16] 0.0, 128
          %366 = vxpose.xlu0.b32.cont [10/16] 0.0, 128
          %367 = vxpose.xlu0.b32.cont [11/16] 0.0, 128
          %368 = vxpose.xlu0.b32.cont [12/16] 0.0, 128
          %369 = vxpose.xlu0.b32.cont [13/16] 0.0, 128
          %370 = vxpose.xlu0.b32.cont [14/16] 0.0, 128
          %371 = vxpose.xlu0.b32.cont [15/16] 0.0, 128
          %372 = vxpose.xlu0.b32.end [16/16] 0.0, 128
          %v373 = vpop.trf.xlu0
          %v374 = vpop.trf.xlu0
          %v375 = vpop.trf.xlu0
          %v376 = vpop.trf.xlu0
          %v377 = vpop.trf.xlu0
          %v378 = vpop.trf.xlu0
          %v379 = vpop.trf.xlu0
          %v380 = vpop.trf.xlu0
          %v381 = vpop.trf.xlu0
          %v382 = vpop.trf.xlu0
          %v383 = vpop.trf.xlu0
          %v384 = vpop.trf.xlu0
          %v385 = vpop.trf.xlu0
          %v386 = vpop.trf.xlu0
          %v387 = vpop.trf.xlu0
          %v388 = vpop.trf.xlu0
          %389 = vxpose.xlu0.b32.start [1/16] %v352, 128
          %390 = vxpose.xlu0.b32.cont [2/16] 0.0, 128
          %391 = vxpose.xlu0.b32.cont [3/16] 0.0, 128
          %392 = vxpose.xlu0.b32.cont [4/16] 0.0, 128
          %393 = vxpose.xlu0.b32.cont [5/16] 0.0, 128
          %394 = vxpose.xlu0.b32.cont [6/16] 0.0, 128
          %395 = vxpose.xlu0.b32.cont [7/16] 0.0, 128
          %396 = vxpose.xlu0.b32.cont [8/16] 0.0, 128
          %397 = vxpose.xlu0.b32.cont [9/16] 0.0, 128
          %398 = vxpose.xlu0.b32.cont [10/16] 0.0, 128
          %399 = vxpose.xlu0.b32.cont [11/16] 0.0, 128
          %400 = vxpose.xlu0.b32.cont [12/16] 0.0, 128
          %401 = vxpose.xlu0.b32.cont [13/16] 0.0, 128
          %402 = vxpose.xlu0.b32.cont [14/16] 0.0, 128
          %403 = vxpose.xlu0.b32.cont [15/16] 0.0, 128
          %404 = vxpose.xlu0.b32.end [16/16] 0.0, 128
          %v405 = vpop.trf.xlu0
          %v406 = vpop.trf.xlu0
          %v407 = vpop.trf.xlu0
          %v408 = vpop.trf.xlu0
          %v409 = vpop.trf.xlu0
          %v410 = vpop.trf.xlu0
          %v411 = vpop.trf.xlu0
          %v412 = vpop.trf.xlu0
          %v413 = vpop.trf.xlu0
          %v414 = vpop.trf.xlu0
          %v415 = vpop.trf.xlu0
          %v416 = vpop.trf.xlu0
          %v417 = vpop.trf.xlu0
          %v418 = vpop.trf.xlu0
          %v419 = vpop.trf.xlu0
          %v420 = vpop.trf.xlu0
          %vm421 = vcmask 64512
          %v423 = vsel %vm421, %v373, 0
          %v426 = vsel %vm421, %v374, 0
          %v429 = vsel %vm421, %v375, 0
          %v432 = vsel %vm421, %v376, 0
          %v435 = vsel %vm421, %v377, 0
          %v438 = vsel %vm421, %v378, 0
          %v441 = vsel %vm421, %v379, 0
          %v444 = vsel %vm421, %v380, 0
          %v447 = vsel %vm421, %v381, 0
          %v450 = vsel %vm421, %v382, 0
          %v453 = vsel %vm421, %v383, 0
          %v456 = vsel %vm421, %v384, 0
          %v459 = vsel %vm421, %v385, 0
          %v462 = vsel %vm421, %v386, 0
          %v465 = vsel %vm421, %v387, 0
          %v468 = vsel %vm421, %v388, 0
          %v471 = vsel %vm421, %v405, 0
          %v474 = vsel %vm421, %v406, 0
          %v477 = vsel %vm421, %v407, 0
          %v480 = vsel %vm421, %v408, 0
          %v483 = vsel %vm421, %v409, 0
          %v486 = vsel %vm421, %v410, 0
          %v489 = vsel %vm421, %v411, 0
          %v492 = vsel %vm421, %v412, 0
          %v495 = vsel %vm421, %v413, 0
          %v498 = vsel %vm421, %v414, 0
          %v501 = vsel %vm421, %v415, 0
          %v504 = vsel %vm421, %v416, 0
          %v507 = vsel %vm421, %v417, 0
          %v510 = vsel %vm421, %v418, 0
          %v513 = vsel %vm421, %v419, 0
          %v516 = vsel %vm421, %v420, 0
          %518 = vmatprep.subr.mxu0 %v348
          %519 = vmatpush1.msra.mxu0 %v347
          %520 = vmatprep.subr.mxu0 0.0
          %521 = vmatpush1.msra.mxu0 0.0
          %522 = vmatprep.subr.mxu0 0.0
          %523 = vmatpush1.msra.mxu0 0.0
          %524 = vmatprep.subr.mxu0 0.0
          %525 = vmatpush1.msra.mxu0 0.0
          %526 = vmatprep.subr.mxu0 0.0
          %527 = vmatpush1.msra.mxu0 0.0
          %528 = vmatprep.subr.mxu0 0.0
          %529 = vmatpush1.msra.mxu0 0.0
          %530 = vmatprep.subr.mxu0 0.0
          %531 = vmatpush1.msra.mxu0 0.0
          %532 = vmatprep.subr.mxu0 0.0
          %533 = vmatpush1.msra.mxu0 0.0
          %534 = vmatprep.subr.mxu0 0.0
          %535 = vmatpush1.msra.mxu0 0.0
          %536 = vmatprep.subr.mxu0 0.0
          %537 = vmatpush1.msra.mxu0 0.0
          %538 = vmatprep.subr.mxu0 0.0
          %539 = vmatpush1.msra.mxu0 0.0
          %540 = vmatprep.subr.mxu0 0.0
          %541 = vmatpush1.msra.mxu0 0.0
          %542 = vmatprep.subr.mxu0 0.0
          %543 = vmatpush1.msra.mxu0 0.0
          %544 = vmatprep.subr.mxu0 0.0
          %545 = vmatpush1.msra.mxu0 0.0
          %546 = vmatprep.subr.mxu0 0.0
          %547 = vmatpush1.msra.mxu0 0.0
          %548 = vmatprep.subr.mxu0 0.0
          %549 = vmatpush1.msra.mxu0 0.0
          %550 = vmatprep.subr.mxu0 0.0
          %551 = vmatpush1.msra.mxu0 0.0
          %552 = vmatprep.subr.mxu0 0.0
          %553 = vmatpush1.msra.mxu0 0.0
          %554 = vmatprep.subr.mxu0 0.0
          %555 = vmatpush1.msra.mxu0 0.0
          %556 = vmatprep.subr.mxu0 0.0
          %557 = vmatpush1.msra.mxu0 0.0
          %558 = vmatprep.subr.mxu0 0.0
          %559 = vmatpush1.msra.mxu0 0.0
          %560 = vmatprep.subr.mxu0 0.0
          %561 = vmatpush1.msra.mxu0 0.0
          %562 = vmatprep.subr.mxu0 0.0
          %563 = vmatpush1.msra.mxu0 0.0
          %564 = vmatprep.subr.mxu0 0.0
          %565 = vmatpush1.msra.mxu0 0.0
          %566 = vmatprep.subr.mxu0 0.0
          %567 = vmatpush1.msra.mxu0 0.0
          %568 = vmatprep.subr.mxu0 0.0
          %569 = vmatpush1.msra.mxu0 0.0
          %570 = vmatprep.subr.mxu0 0.0
          %571 = vmatpush1.msra.mxu0 0.0
          %572 = vmatprep.subr.mxu0 0.0
          %573 = vmatpush1.msra.mxu0 0.0
          %574 = vmatprep.subr.mxu0 0.0
          %575 = vmatpush1.msra.mxu0 0.0
          %576 = vmatprep.subr.mxu0 0.0
          %577 = vmatpush1.msra.mxu0 0.0
          %578 = vmatprep.subr.mxu0 0.0
          %579 = vmatpush1.msra.mxu0 0.0
          %580 = vmatprep.subr.mxu0 0.0
          %581 = vmatpush1.msra.mxu0 0.0
          %582 = vmatprep.mubr.f32.mxu0 0.0
          %583 = vmatmul.mubr.f32.gmra.mrb[0].mxu0 %v423
          %v584 = vpop.f32.mrb[0].mxu0
          %v585 = vadd.f32 0.0, %v584
          %v586 = vpop.f32.mrb[0].mxu0
          %v587 = vadd.f32 0.0, %v586
          %588 = vmatprep.mubr.f32.mxu0 0.0
          %589 = vmatmul.mubr.f32.gmra.mrb[0].mxu0 %v426
          %v590 = vpop.f32.mrb[0].mxu0
          %v591 = vadd.f32 0.0, %v590
          %v592 = vpop.f32.mrb[0].mxu0
          %v593 = vadd.f32 0.0, %v592
          %594 = vmatprep.mubr.f32.mxu0 0.0
          %595 = vmatmul.mubr.f32.gmra.mrb[0].mxu0 %v429
          %v596 = vpop.f32.mrb[0].mxu0
          %v597 = vadd.f32 0.0, %v596
          %v598 = vpop.f32.mrb[0].mxu0
          %v599 = vadd.f32 0.0, %v598
          %600 = vmatprep.mubr.f32.mxu0 0.0
          %601 = vmatmul.mubr.f32.gmra.mrb[0].mxu0 %v432
          %v602 = vpop.f32.mrb[0].mxu0
          %v603 = vadd.f32 0.0, %v602
          %v604 = vpop.f32.mrb[0].mxu0
          %v605 = vadd.f32 0.0, %v604
          %606 = vmatprep.mubr.f32.mxu0 0.0
          %607 = vmatmul.mubr.f32.gmra.mrb[0].mxu0 %v435
          %v608 = vpop.f32.mrb[0].mxu0
          %v609 = vadd.f32 0.0, %v608
          %v610 = vpop.f32.mrb[0].mxu0
          %v611 = vadd.f32 0.0, %v610
          %612 = vmatprep.mubr.f32.mxu0 0.0
          %613 = vmatmul.mubr.f32.gmra.mrb[0].mxu0 %v438
          %v614 = vpop.f32.mrb[0].mxu0
          %v615 = vadd.f32 0.0, %v614
          %v616 = vpop.f32.mrb[0].mxu0
          %v617 = vadd.f32 0.0, %v616
          %618 = vmatprep.mubr.f32.mxu0 0.0
          %619 = vmatmul.mubr.f32.gmra.mrb[0].mxu0 %v441
          %v620 = vpop.f32.mrb[0].mxu0
          %v621 = vadd.f32 0.0, %v620
          %v622 = vpop.f32.mrb[0].mxu0
          %v623 = vadd.f32 0.0, %v622
          %624 = vmatprep.mubr.f32.mxu0 0.0
          %625 = vmatmul.mubr.f32.gmra.mrb[0].mxu0 %v444
          %v626 = vpop.f32.mrb[0].mxu0
          %v627 = vadd.f32 0.0, %v626
          %v628 = vpop.f32.mrb[0].mxu0
          %v629 = vadd.f32 0.0, %v628
          %630 = vmatprep.mubr.f32.mxu0 0.0
          %631 = vmatmul.mubr.f32.gmra.mrb[0].mxu0 %v447
          %v632 = vpop.f32.mrb[0].mxu0
          %v633 = vadd.f32 0.0, %v632
          %v634 = vpop.f32.mrb[0].mxu0
          %v635 = vadd.f32 0.0, %v634
          %636 = vmatprep.mubr.f32.mxu0 0.0
          %637 = vmatmul.mubr.f32.gmra.mrb[0].mxu0 %v450
          %v638 = vpop.f32.mrb[0].mxu0
          %v639 = vadd.f32 0.0, %v638
          %v640 = vpop.f32.mrb[0].mxu0
          %v641 = vadd.f32 0.0, %v640
          %642 = vmatprep.mubr.f32.mxu0 0.0
          %643 = vmatmul.mubr.f32.gmra.mrb[0].mxu0 %v453
          %v644 = vpop.f32.mrb[0].mxu0
          %v645 = vadd.f32 0.0, %v644
          %v646 = vpop.f32.mrb[0].mxu0
          %v647 = vadd.f32 0.0, %v646
          %648 = vmatprep.mubr.f32.mxu0 0.0
          %649 = vmatmul.mubr.f32.gmra.mrb[0].mxu0 %v456
          %v650 = vpop.f32.mrb[0].mxu0
          %v651 = vadd.f32 0.0, %v650
          %v652 = vpop.f32.mrb[0].mxu0
          %v653 = vadd.f32 0.0, %v652
          %654 = vmatprep.mubr.f32.mxu0 0.0
          %655 = vmatmul.mubr.f32.gmra.mrb[0].mxu0 %v459
          %v656 = vpop.f32.mrb[0].mxu0
          %v657 = vadd.f32 0.0, %v656
          %v658 = vpop.f32.mrb[0].mxu0
          %v659 = vadd.f32 0.0, %v658
          %660 = vmatprep.mubr.f32.mxu0 0.0
          %661 = vmatmul.mubr.f32.gmra.mrb[0].mxu0 %v462
          %v662 = vpop.f32.mrb[0].mxu0
          %v663 = vadd.f32 0.0, %v662
          %v664 = vpop.f32.mrb[0].mxu0
          %v665 = vadd.f32 0.0, %v664
          %666 = vmatprep.mubr.f32.mxu0 0.0
          %667 = vmatmul.mubr.f32.gmra.mrb[0].mxu0 %v465
          %v668 = vpop.f32.mrb[0].mxu0
          %v669 = vadd.f32 0.0, %v668
          %v670 = vpop.f32.mrb[0].mxu0
          %v671 = vadd.f32 0.0, %v670
          %672 = vmatprep.mubr.f32.mxu0 0.0
          %673 = vmatmul.mubr.f32.gmra.mrb[0].mxu0 %v468
          %v674 = vpop.f32.mrb[0].mxu0
          %v675 = vadd.f32 0.0, %v674
          %v676 = vpop.f32.mrb[0].mxu0
          %v677 = vadd.f32 0.0, %v676
          %678 = vmatprep.mubr.f32.mxu0 0.0
          %679 = vmatmul.mubr.f32.gmra.mrb[0].mxu0 %v471
          %v680 = vpop.f32.mrb[0].mxu0
          %v681 = vadd.f32 0.0, %v680
          %v682 = vpop.f32.mrb[0].mxu0
          %v683 = vadd.f32 0.0, %v682
          %684 = vmatprep.mubr.f32.mxu0 0.0
          %685 = vmatmul.mubr.f32.gmra.mrb[0].mxu0 %v474
          %v686 = vpop.f32.mrb[0].mxu0
          %v687 = vadd.f32 0.0, %v686
          %v688 = vpop.f32.mrb[0].mxu0
          %v689 = vadd.f32 0.0, %v688
          %690 = vmatprep.mubr.f32.mxu0 0.0
          %691 = vmatmul.mubr.f32.gmra.mrb[0].mxu0 %v477
          %v692 = vpop.f32.mrb[0].mxu0
          %v693 = vadd.f32 0.0, %v692
          %v694 = vpop.f32.mrb[0].mxu0
          %v695 = vadd.f32 0.0, %v694
          %696 = vmatprep.mubr.f32.mxu0 0.0
          %697 = vmatmul.mubr.f32.gmra.mrb[0].mxu0 %v480
          %v698 = vpop.f32.mrb[0].mxu0
          %v699 = vadd.f32 0.0, %v698
          %v700 = vpop.f32.mrb[0].mxu0
          %v701 = vadd.f32 0.0, %v700
          %702 = vmatprep.mubr.f32.mxu0 0.0
          %703 = vmatmul.mubr.f32.gmra.mrb[0].mxu0 %v483
          %v704 = vpop.f32.mrb[0].mxu0
          %v705 = vadd.f32 0.0, %v704
          %v706 = vpop.f32.mrb[0].mxu0
          %v707 = vadd.f32 0.0, %v706
          %708 = vmatprep.mubr.f32.mxu0 0.0
          %709 = vmatmul.mubr.f32.gmra.mrb[0].mxu0 %v486
          %v710 = vpop.f32.mrb[0].mxu0
          %v711 = vadd.f32 0.0, %v710
          %v712 = vpop.f32.mrb[0].mxu0
          %v713 = vadd.f32 0.0, %v712
          %714 = vmatprep.mubr.f32.mxu0 0.0
          %715 = vmatmul.mubr.f32.gmra.mrb[0].mxu0 %v489
          %v716 = vpop.f32.mrb[0].mxu0
          %v717 = vadd.f32 0.0, %v716
          %v718 = vpop.f32.mrb[0].mxu0
          %v719 = vadd.f32 0.0, %v718
          %720 = vmatprep.mubr.f32.mxu0 0.0
          %721 = vmatmul.mubr.f32.gmra.mrb[0].mxu0 %v492
          %v722 = vpop.f32.mrb[0].mxu0
          %v723 = vadd.f32 0.0, %v722
          %v724 = vpop.f32.mrb[0].mxu0
          %v725 = vadd.f32 0.0, %v724
          %726 = vmatprep.mubr.f32.mxu0 0.0
          %727 = vmatmul.mubr.f32.gmra.mrb[0].mxu0 %v495
          %v728 = vpop.f32.mrb[0].mxu0
          %v729 = vadd.f32 0.0, %v728
          %v730 = vpop.f32.mrb[0].mxu0
          %v731 = vadd.f32 0.0, %v730
          %732 = vmatprep.mubr.f32.mxu0 0.0
          %733 = vmatmul.mubr.f32.gmra.mrb[0].mxu0 %v498
          %v734 = vpop.f32.mrb[0].mxu0
          %v735 = vadd.f32 0.0, %v734
          %v736 = vpop.f32.mrb[0].mxu0
          %v737 = vadd.f32 0.0, %v736
          %738 = vmatprep.mubr.f32.mxu0 0.0
          %739 = vmatmul.mubr.f32.gmra.mrb[0].mxu0 %v501
          %v740 = vpop.f32.mrb[0].mxu0
          %v741 = vadd.f32 0.0, %v740
          %v742 = vpop.f32.mrb[0].mxu0
          %v743 = vadd.f32 0.0, %v742
          %744 = vmatprep.mubr.f32.mxu0 0.0
          %745 = vmatmul.mubr.f32.gmra.mrb[0].mxu0 %v504
          %v746 = vpop.f32.mrb[0].mxu0
          %v747 = vadd.f32 0.0, %v746
          %v748 = vpop.f32.mrb[0].mxu0
          %v749 = vadd.f32 0.0, %v748
          %750 = vmatprep.mubr.f32.mxu0 0.0
          %751 = vmatmul.mubr.f32.gmra.mrb[0].mxu0 %v507
          %v752 = vpop.f32.mrb[0].mxu0
          %v753 = vadd.f32 0.0, %v752
          %v754 = vpop.f32.mrb[0].mxu0
          %v755 = vadd.f32 0.0, %v754
          %756 = vmatprep.mubr.f32.mxu0 0.0
          %757 = vmatmul.mubr.f32.gmra.mrb[0].mxu0 %v510
          %v758 = vpop.f32.mrb[0].mxu0
          %v759 = vadd.f32 0.0, %v758
          %v760 = vpop.f32.mrb[0].mxu0
          %v761 = vadd.f32 0.0, %v760
          %762 = vmatprep.mubr.f32.mxu0 0.0
          %763 = vmatmul.mubr.f32.gmra.mrb[0].mxu0 %v513
          %v764 = vpop.f32.mrb[0].mxu0
          %v765 = vadd.f32 0.0, %v764
          %v766 = vpop.f32.mrb[0].mxu0
          %v767 = vadd.f32 0.0, %v766
          %768 = vmatprep.mubr.f32.mxu0 0.0
          %769 = vmatmul.mubr.f32.gmra.mrb[0].mxu0 %v516
          %v770 = vpop.f32.mrb[0].mxu0
          %v771 = vadd.f32 0.0, %v770
          %v772 = vpop.f32.mrb[0].mxu0
          %v773 = vadd.f32 0.0, %v772
          %774 = vdwg.mxu0
          %s775 = scalar_lea.vmem [#allocation2], %s342
          %v776 = vld [vmem:[%s775] sm:$0x3]
          %v777 = vmax.f32 %v585, %v597
          %v778 = vmax.f32 %v591, %v603
          %v779 = vmax.f32 %v777, %v609
          %v780 = vmax.f32 %v778, %v615
          %v781 = vmax.f32 %v779, %v621
          %v782 = vmax.f32 %v780, %v627
          %v783 = vmax.f32 %v781, %v633
          %v784 = vmax.f32 %v782, %v639
          %v785 = vmax.f32 %v783, %v645
          %v786 = vmax.f32 %v784, %v651
          %v787 = vmax.f32 %v785, %v657
          %v788 = vmax.f32 %v786, %v663
          %v789 = vmax.f32 %v787, %v669
          %v790 = vmax.f32 %v788, %v675
          %v791 = vmax.f32 %v789, %v681
          %v792 = vmax.f32 %v790, %v687
          %v793 = vmax.f32 %v791, %v693
          %v794 = vmax.f32 %v792, %v699
          %v795 = vmax.f32 %v793, %v705
          %v796 = vmax.f32 %v794, %v711
          %v797 = vmax.f32 %v795, %v717
          %v798 = vmax.f32 %v796, %v723
          %v799 = vmax.f32 %v797, %v729
          %v800 = vmax.f32 %v798, %v735
          %v801 = vmax.f32 %v799, %v741
          %v802 = vmax.f32 %v800, %v747
          %v803 = vmax.f32 %v801, %v753
          %v804 = vmax.f32 %v802, %v759
          %v805 = vmax.f32 %v803, %v765
          %v806 = vmax.f32 %v804, %v771
          %v807 = vmax.f32 %v805, %v806
          %v808 = vrot.slane %v807, 4
          %v809 = vmax.f32 %v807, %v808
          %v810 = vrot.slane %v809, 2
          %v811 = vmax.f32 %v809, %v810
          %v812 = vrot.slane %v811, 1
          %v813 = vmax.f32 %v811, %v812
          %v814 = vmax.f32 %v587, %v599
          %v815 = vmax.f32 %v593, %v605
          %v816 = vmax.f32 %v814, %v611
          %v817 = vmax.f32 %v815, %v617
          %v818 = vmax.f32 %v816, %v623
          %v819 = vmax.f32 %v817, %v629
          %v820 = vmax.f32 %v818, %v635
          %v821 = vmax.f32 %v819, %v641
          %v822 = vmax.f32 %v820, %v647
          %v823 = vmax.f32 %v821, %v653
          %v824 = vmax.f32 %v822, %v659
          %v825 = vmax.f32 %v823, %v665
          %v826 = vmax.f32 %v824, %v671
          %v827 = vmax.f32 %v825, %v677
          %v828 = vmax.f32 %v826, %v683
          %v829 = vmax.f32 %v827, %v689
          %v830 = vmax.f32 %v828, %v695
          %v831 = vmax.f32 %v829, %v701
          %v832 = vmax.f32 %v830, %v707
          %v833 = vmax.f32 %v831, %v713
          %v834 = vmax.f32 %v832, %v719
          %v835 = vmax.f32 %v833, %v725
          %v836 = vmax.f32 %v834, %v731
          %v837 = vmax.f32 %v835, %v737
          %v838 = vmax.f32 %v836, %v743
          %v839 = vmax.f32 %v837, %v749
          %v840 = vmax.f32 %v838, %v755
          %v841 = vmax.f32 %v839, %v761
          %v842 = vmax.f32 %v840, %v767
          %v843 = vmax.f32 %v841, %v773
          %v844 = vmax.f32 %v842, %v843
          %v845 = vrot.slane %v844, 4
          %v846 = vmax.f32 %v844, %v845
          %v847 = vrot.slane %v846, 2
          %v848 = vmax.f32 %v846, %v847
          %v849 = vrot.slane %v848, 1
          %v850 = vmax.f32 %v848, %v849
          %v853 = vcombine.low %v813, %v850
          %v855 = vunpack.c.l.s4 1966171168
          %v856 = vunpack.c.0.s8 %v855
          %v857 = vlaneseq
          %v858 = vshrl.u32 %v857, 7
          %v859 = vsub.s32 %v856, %v858
          %v860 = vrot.slane %v853, %v859
          %v862 = vunpack.c.l.s4 1966171168
          %v863 = vunpack.c.0.s8 %v862
          %v864 = vlaneseq
          %v865 = vshrl.u32 %v864, 7
          %v866 = vsub.s32 %v863, %v865
          %v867 = vrot.slane %v860, %v866
          %v869 = vmax.f32 %v776, %v867
          %v870 = vsub.f32 %v776, %v869
          %v871 = vmul.f32 %v870, 1.442695
          %v872 = vpow.pop %v871
          %v874 = vlaneseq
          %v875 = vshrl.u32 %v874, 7
          %v876 = vsub.s32 0, %v875
          %v877 = vrot.slane %v869, %v876
          %v878 = vlaneseq
          %v879 = vshrl.u32 %v878, 7
          %v880 = vsub.s32 1, %v879
          %v881 = vrot.slane %v869, %v880
          %v884 = vsub.f32 %v585, %v877
          %v885 = vsub.f32 %v587, %v881
          %v886 = vsub.f32 %v591, %v877
          %v887 = vsub.f32 %v593, %v881
          %v888 = vsub.f32 %v597, %v877
          %v889 = vsub.f32 %v599, %v881
          %v890 = vsub.f32 %v603, %v877
          %v891 = vsub.f32 %v605, %v881
          %v892 = vsub.f32 %v609, %v877
          %v893 = vsub.f32 %v611, %v881
          %v894 = vsub.f32 %v615, %v877
          %v895 = vsub.f32 %v617, %v881
          %v896 = vsub.f32 %v621, %v877
          %v897 = vsub.f32 %v623, %v881
          %v898 = vsub.f32 %v627, %v877
          %v899 = vsub.f32 %v629, %v881
          %v900 = vsub.f32 %v633, %v877
          %v901 = vsub.f32 %v635, %v881
          %v902 = vsub.f32 %v639, %v877
          %v903 = vsub.f32 %v641, %v881
          %v904 = vsub.f32 %v645, %v877
          %v905 = vsub.f32 %v647, %v881
          %v906 = vsub.f32 %v651, %v877
          %v907 = vsub.f32 %v653, %v881
          %v908 = vsub.f32 %v657, %v877
          %v909 = vsub.f32 %v659, %v881
          %v910 = vsub.f32 %v663, %v877
          %v911 = vsub.f32 %v665, %v881
          %v912 = vsub.f32 %v669, %v877
          %v913 = vsub.f32 %v671, %v881
          %v914 = vsub.f32 %v675, %v877
          %v915 = vsub.f32 %v677, %v881
          %v916 = vsub.f32 %v681, %v877
          %v917 = vsub.f32 %v683, %v881
          %v918 = vsub.f32 %v687, %v877
          %v919 = vsub.f32 %v689, %v881
          %v920 = vsub.f32 %v693, %v877
          %v921 = vsub.f32 %v695, %v881
          %v922 = vsub.f32 %v699, %v877
          %v923 = vsub.f32 %v701, %v881
          %v924 = vsub.f32 %v705, %v877
          %v925 = vsub.f32 %v707, %v881
          %v926 = vsub.f32 %v711, %v877
          %v927 = vsub.f32 %v713, %v881
          %v928 = vsub.f32 %v717, %v877
          %v929 = vsub.f32 %v719, %v881
          %v930 = vsub.f32 %v723, %v877
          %v931 = vsub.f32 %v725, %v881
          %v932 = vsub.f32 %v729, %v877
          %v933 = vsub.f32 %v731, %v881
          %v934 = vsub.f32 %v735, %v877
          %v935 = vsub.f32 %v737, %v881
          %v936 = vsub.f32 %v741, %v877
          %v937 = vsub.f32 %v743, %v881
          %v938 = vsub.f32 %v747, %v877
          %v939 = vsub.f32 %v749, %v881
          %v940 = vsub.f32 %v753, %v877
          %v941 = vsub.f32 %v755, %v881
          %v942 = vsub.f32 %v759, %v877
          %v943 = vsub.f32 %v761, %v881
          %v944 = vsub.f32 %v765, %v877
          %v945 = vsub.f32 %v767, %v881
          %v946 = vsub.f32 %v771, %v877
          %v947 = vsub.f32 %v773, %v881
          %v948 = vmul.f32 %v884, 1.442695
          %v949 = vpow.pop %v948
          %v950 = vmul.f32 %v885, 1.442695
          %v951 = vpow.pop %v950
          %v952 = vmul.f32 %v886, 1.442695
          %v953 = vpow.pop %v952
          %v954 = vmul.f32 %v887, 1.442695
          %v955 = vpow.pop %v954
          %v956 = vmul.f32 %v888, 1.442695
          %v957 = vpow.pop %v956
          %v958 = vmul.f32 %v889, 1.442695
          %v959 = vpow.pop %v958
          %v960 = vmul.f32 %v890, 1.442695
          %v961 = vpow.pop %v960
          %v962 = vmul.f32 %v891, 1.442695
          %v963 = vpow.pop %v962
          %v964 = vmul.f32 %v892, 1.442695
          %v965 = vpow.pop %v964
          %v966 = vmul.f32 %v893, 1.442695
          %v967 = vpow.pop %v966
          %v968 = vmul.f32 %v894, 1.442695
          %v969 = vpow.pop %v968
          %v970 = vmul.f32 %v895, 1.442695
          %v971 = vpow.pop %v970
          %v972 = vmul.f32 %v896, 1.442695
          %v973 = vpow.pop %v972
          %v974 = vmul.f32 %v897, 1.442695
          %v975 = vpow.pop %v974
          %v976 = vmul.f32 %v898, 1.442695
          %v977 = vpow.pop %v976
          %v978 = vmul.f32 %v899, 1.442695
          %v979 = vpow.pop %v978
          %v980 = vmul.f32 %v900, 1.442695
          %v981 = vpow.pop %v980
          %v982 = vmul.f32 %v901, 1.442695
          %v983 = vpow.pop %v982
          %v984 = vmul.f32 %v902, 1.442695
          %v985 = vpow.pop %v984
          %v986 = vmul.f32 %v903, 1.442695
          %v987 = vpow.pop %v986
          %v988 = vmul.f32 %v904, 1.442695
          %v989 = vpow.pop %v988
          %v990 = vmul.f32 %v905, 1.442695
          %v991 = vpow.pop %v990
          %v992 = vmul.f32 %v906, 1.442695
          %v993 = vpow.pop %v992
          %v994 = vmul.f32 %v907, 1.442695
          %v995 = vpow.pop %v994
          %v996 = vmul.f32 %v908, 1.442695
          %v997 = vpow.pop %v996
          %v998 = vmul.f32 %v909, 1.442695
          %v999 = vpow.pop %v998
          %v1000 = vmul.f32 %v910, 1.442695
          %v1001 = vpow.pop %v1000
          %v1002 = vmul.f32 %v911, 1.442695
          %v1003 = vpow.pop %v1002
          %v1004 = vmul.f32 %v912, 1.442695
          %v1005 = vpow.pop %v1004
          %v1006 = vmul.f32 %v913, 1.442695
          %v1007 = vpow.pop %v1006
          %v1008 = vmul.f32 %v914, 1.442695
          %v1009 = vpow.pop %v1008
          %v1010 = vmul.f32 %v915, 1.442695
          %v1011 = vpow.pop %v1010
          %v1012 = vmul.f32 %v916, 1.442695
          %v1013 = vpow.pop %v1012
          %v1014 = vmul.f32 %v917, 1.442695
          %v1015 = vpow.pop %v1014
          %v1016 = vmul.f32 %v918, 1.442695
          %v1017 = vpow.pop %v1016
          %v1018 = vmul.f32 %v919, 1.442695
          %v1019 = vpow.pop %v1018
          %v1020 = vmul.f32 %v920, 1.442695
          %v1021 = vpow.pop %v1020
          %v1022 = vmul.f32 %v921, 1.442695
          %v1023 = vpow.pop %v1022
          %v1024 = vmul.f32 %v922, 1.442695
          %v1025 = vpow.pop %v1024
          %v1026 = vmul.f32 %v923, 1.442695
          %v1027 = vpow.pop %v1026
          %v1028 = vmul.f32 %v924, 1.442695
          %v1029 = vpow.pop %v1028
          %v1030 = vmul.f32 %v925, 1.442695
          %v1031 = vpow.pop %v1030
          %v1032 = vmul.f32 %v926, 1.442695
          %v1033 = vpow.pop %v1032
          %v1034 = vmul.f32 %v927, 1.442695
          %v1035 = vpow.pop %v1034
          %v1036 = vmul.f32 %v928, 1.442695
          %v1037 = vpow.pop %v1036
          %v1038 = vmul.f32 %v929, 1.442695
          %v1039 = vpow.pop %v1038
          %v1040 = vmul.f32 %v930, 1.442695
          %v1041 = vpow.pop %v1040
          %v1042 = vmul.f32 %v931, 1.442695
          %v1043 = vpow.pop %v1042
          %v1044 = vmul.f32 %v932, 1.442695
          %v1045 = vpow.pop %v1044
          %v1046 = vmul.f32 %v933, 1.442695
          %v1047 = vpow.pop %v1046
          %v1048 = vmul.f32 %v934, 1.442695
          %v1049 = vpow.pop %v1048
          %v1050 = vmul.f32 %v935, 1.442695
          %v1051 = vpow.pop %v1050
          %v1052 = vmul.f32 %v936, 1.442695
          %v1053 = vpow.pop %v1052
          %v1054 = vmul.f32 %v937, 1.442695
          %v1055 = vpow.pop %v1054
          %v1056 = vmul.f32 %v938, 1.442695
          %v1057 = vpow.pop %v1056
          %v1058 = vmul.f32 %v939, 1.442695
          %v1059 = vpow.pop %v1058
          %v1060 = vmul.f32 %v940, 1.442695
          %v1061 = vpow.pop %v1060
          %v1062 = vmul.f32 %v941, 1.442695
          %v1063 = vpow.pop %v1062
          %v1064 = vmul.f32 %v942, 1.442695
          %v1065 = vpow.pop %v1064
          %v1066 = vmul.f32 %v943, 1.442695
          %v1067 = vpow.pop %v1066
          %v1068 = vmul.f32 %v944, 1.442695
          %v1069 = vpow.pop %v1068
          %v1070 = vmul.f32 %v945, 1.442695
          %v1071 = vpow.pop %v1070
          %v1072 = vmul.f32 %v946, 1.442695
          %v1073 = vpow.pop %v1072
          %v1074 = vmul.f32 %v947, 1.442695
          %v1075 = vpow.pop %v1074
          %s1076 = scalar_lea.vmem [#allocation3], %s342
          %v1077 = vld [vmem:[%s1076] sm:$0x3]
          %v1078 = vmul.f32 %v872, %v1077
          %v1079 = vadd.f32 %v949, %v953
          %v1080 = vadd.f32 %v1079, %v957
          %v1081 = vadd.f32 %v1080, %v961
          %v1082 = vadd.f32 %v1081, %v965
          %v1083 = vadd.f32 %v1082, %v969
          %v1084 = vadd.f32 %v1083, %v973
          %v1085 = vadd.f32 %v1084, %v977
          %v1086 = vadd.f32 %v1085, %v981
          %v1087 = vadd.f32 %v1086, %v985
          %v1088 = vadd.f32 %v1087, %v989
          %v1089 = vadd.f32 %v1088, %v993
          %v1090 = vadd.f32 %v1089, %v997
          %v1091 = vadd.f32 %v1090, %v1001
          %v1092 = vadd.f32 %v1091, %v1005
          %v1093 = vadd.f32 %v1092, %v1009
          %v1094 = vadd.f32 %v1093, %v1013
          %v1095 = vadd.f32 %v1094, %v1017
          %v1096 = vadd.f32 %v1095, %v1021
          %v1097 = vadd.f32 %v1096, %v1025
          %v1098 = vadd.f32 %v1097, %v1029
          %v1099 = vadd.f32 %v1098, %v1033
          %v1100 = vadd.f32 %v1099, %v1037
          %v1101 = vadd.f32 %v1100, %v1041
          %v1102 = vadd.f32 %v1101, %v1045
          %v1103 = vadd.f32 %v1102, %v1049
          %v1104 = vadd.f32 %v1103, %v1053
          %v1105 = vadd.f32 %v1104, %v1057
          %v1106 = vadd.f32 %v1105, %v1061
          %v1107 = vadd.f32 %v1106, %v1065
          %v1108 = vadd.f32 %v1107, %v1069
          %v1109 = vadd.f32 %v1108, %v1073
          %v1110 = vrot.slane %v1109, 4
          %v1111 = vadd.f32 %v1109, %v1110
          %v1112 = vrot.slane %v1111, 2
          %v1113 = vadd.f32 %v1111, %v1112
          %v1114 = vrot.slane %v1113, 1
          %v1115 = vadd.f32 %v1113, %v1114
          %v1116 = vadd.f32 %v951, %v955
          %v1117 = vadd.f32 %v1116, %v959
          %v1118 = vadd.f32 %v1117, %v963
          %v1119 = vadd.f32 %v1118, %v967
          %v1120 = vadd.f32 %v1119, %v971
          %v1121 = vadd.f32 %v1120, %v975
          %v1122 = vadd.f32 %v1121, %v979
          %v1123 = vadd.f32 %v1122, %v983
          %v1124 = vadd.f32 %v1123, %v987
          %v1125 = vadd.f32 %v1124, %v991
          %v1126 = vadd.f32 %v1125, %v995
          %v1127 = vadd.f32 %v1126, %v999
          %v1128 = vadd.f32 %v1127, %v1003
          %v1129 = vadd.f32 %v1128, %v1007
          %v1130 = vadd.f32 %v1129, %v1011
          %v1131 = vadd.f32 %v1130, %v1015
          %v1132 = vadd.f32 %v1131, %v1019
          %v1133 = vadd.f32 %v1132, %v1023
          %v1134 = vadd.f32 %v1133, %v1027
          %v1135 = vadd.f32 %v1134, %v1031
          %v1136 = vadd.f32 %v1135, %v1035
          %v1137 = vadd.f32 %v1136, %v1039
          %v1138 = vadd.f32 %v1137, %v1043
          %v1139 = vadd.f32 %v1138, %v1047
          %v1140 = vadd.f32 %v1139, %v1051
          %v1141 = vadd.f32 %v1140, %v1055
          %v1142 = vadd.f32 %v1141, %v1059
          %v1143 = vadd.f32 %v1142, %v1063
          %v1144 = vadd.f32 %v1143, %v1067
          %v1145 = vadd.f32 %v1144, %v1071
          %v1146 = vadd.f32 %v1145, %v1075
          %v1147 = vrot.slane %v1146, 4
          %v1148 = vadd.f32 %v1146, %v1147
          %v1149 = vrot.slane %v1148, 2
          %v1150 = vadd.f32 %v1148, %v1149
          %v1151 = vrot.slane %v1150, 1
          %v1152 = vadd.f32 %v1150, %v1151
          %v1155 = vcombine.low %v1115, %v1152
          %v1157 = vunpack.c.l.s4 1966171168
          %v1158 = vunpack.c.0.s8 %v1157
          %v1159 = vlaneseq
          %v1160 = vshrl.u32 %v1159, 7
          %v1161 = vsub.s32 %v1158, %v1160
          %v1162 = vrot.slane %v1155, %v1161
          %v1164 = vunpack.c.l.s4 1966171168
          %v1165 = vunpack.c.0.s8 %v1164
          %v1166 = vlaneseq
          %v1167 = vshrl.u32 %v1166, 7
          %v1168 = vsub.s32 %v1165, %v1167
          %v1169 = vrot.slane %v1162, %v1168
          %v1171 = vadd.f32 %v1078, %v1169
          %v1172 = vlaneseq
          %vm1173 = vcmp.ge.s32.totalorder %v1172, 0
          %vm1174 = vcmp.lt.s32.totalorder %v1172, 256
          %vm1175 = vmand %vm1173, %vm1174
          %1176 = vst.msk [vmem:[%s1076] sm:$0x3] %vm1175, %v1171
          %1177 = vmatprep.subr.mxu0 %v951
          %1178 = vmatpush1.msra.mxu0 %v949
          %1179 = vmatprep.subr.mxu0 %v955
          %1180 = vmatpush1.msra.mxu0 %v953
          %1181 = vmatprep.subr.mxu0 %v959
          %1182 = vmatpush1.msra.mxu0 %v957
          %1183 = vmatprep.subr.mxu0 %v963
          %1184 = vmatpush1.msra.mxu0 %v961
          %1185 = vmatprep.subr.mxu0 %v967
          %1186 = vmatpush1.msra.mxu0 %v965
          %1187 = vmatprep.subr.mxu0 %v971
          %1188 = vmatpush1.msra.mxu0 %v969
          %1189 = vmatprep.subr.mxu0 %v975
          %1190 = vmatpush1.msra.mxu0 %v973
          %1191 = vmatprep.subr.mxu0 %v979
          %1192 = vmatpush1.msra.mxu0 %v977
          %1193 = vmatprep.subr.mxu0 %v983
          %1194 = vmatpush1.msra.mxu0 %v981
          %1195 = vmatprep.subr.mxu0 %v987
          %1196 = vmatpush1.msra.mxu0 %v985
          %1197 = vmatprep.subr.mxu0 %v991
          %1198 = vmatpush1.msra.mxu0 %v989
          %1199 = vmatprep.subr.mxu0 %v995
          %1200 = vmatpush1.msra.mxu0 %v993
          %1201 = vmatprep.subr.mxu0 %v999
          %1202 = vmatpush1.msra.mxu0 %v997
          %1203 = vmatprep.subr.mxu0 %v1003
          %1204 = vmatpush1.msra.mxu0 %v1001
          %1205 = vmatprep.subr.mxu0 %v1007
          %1206 = vmatpush1.msra.mxu0 %v1005
          %1207 = vmatprep.subr.mxu0 %v1011
          %1208 = vmatpush1.msra.mxu0 %v1009
          %1209 = vmatprep.subr.mxu0 %v1015
          %1210 = vmatpush1.msra.mxu0 %v1013
          %1211 = vmatprep.subr.mxu0 %v1019
          %1212 = vmatpush1.msra.mxu0 %v1017
          %1213 = vmatprep.subr.mxu0 %v1023
          %1214 = vmatpush1.msra.mxu0 %v1021
          %1215 = vmatprep.subr.mxu0 %v1027
          %1216 = vmatpush1.msra.mxu0 %v1025
          %1217 = vmatprep.subr.mxu0 %v1031
          %1218 = vmatpush1.msra.mxu0 %v1029
          %1219 = vmatprep.subr.mxu0 %v1035
          %1220 = vmatpush1.msra.mxu0 %v1033
          %1221 = vmatprep.subr.mxu0 %v1039
          %1222 = vmatpush1.msra.mxu0 %v1037
          %1223 = vmatprep.subr.mxu0 %v1043
          %1224 = vmatpush1.msra.mxu0 %v1041
          %1225 = vmatprep.subr.mxu0 %v1047
          %1226 = vmatpush1.msra.mxu0 %v1045
          %1227 = vmatprep.subr.mxu0 %v1051
          %1228 = vmatpush1.msra.mxu0 %v1049
          %1229 = vmatprep.subr.mxu0 %v1055
          %1230 = vmatpush1.msra.mxu0 %v1053
          %1231 = vmatprep.subr.mxu0 %v1059
          %1232 = vmatpush1.msra.mxu0 %v1057
          %1233 = vmatprep.subr.mxu0 %v1063
          %1234 = vmatpush1.msra.mxu0 %v1061
          %1235 = vmatprep.subr.mxu0 %v1067
          %1236 = vmatpush1.msra.mxu0 %v1065
          %1237 = vmatprep.subr.mxu0 %v1071
          %1238 = vmatpush1.msra.mxu0 %v1069
          %1239 = vmatprep.subr.mxu0 %v1075
          %1240 = vmatpush1.msra.mxu0 %v1073
          %1241 = vmatprep.mubr.f32.mxu0 %v356
          %1242 = vmatmul.mubr.f32.gmra.mrb[0].mxu0 %v355
          %v1243 = vpop.f32.mrb[0].mxu0
          %v1244 = vadd.f32 0.0, %v1243
          %v1245 = vpop.f32.mrb[0].mxu0
          %v1246 = vadd.f32 0.0, %v1245
          %1247 = vdwg.mxu0
          %s1248 = smul.addr %s342, 8
          %s1249 = scalar_lea.vmem [#allocation4], %s1248
          %v1250 = vld [vmem:[%s1249] sm:$0xff]
          %v1251 = vld [vmem:[%s1249 + $0x8] sm:$0xff]
          %v1253 = vlaneseq
          %v1254 = vshrl.u32 %v1253, 7
          %v1255 = vsub.s32 0, %v1254
          %v1256 = vrot.slane %v872, %v1255
          %v1257 = vlaneseq
          %v1258 = vshrl.u32 %v1257, 7
          %v1259 = vsub.s32 1, %v1258
          %v1260 = vrot.slane %v872, %v1259
          %v1263 = vmul.f32 %v1256, %v1250
          %v1264 = vmul.f32 %v1260, %v1251
          %v1265 = vadd.f32 %v1263, %v1244
          %v1266 = vadd.f32 %v1264, %v1246
          %1267 = vst [vmem:[%s1249] sm:$0xff] %v1265
          %1268 = vst [vmem:[%s1249 + $0x8] sm:$0xff] %v1266
          %1269 = vst.msk [vmem:[%s775] sm:$0x3] %vm1175, %v869
        $region53: #{tpu_custom_call.1} parent=31 // loop_footer
          %s341 = sadd.s32 1, %s337
        $region54: #{tpu_custom_call.1} parent=31 // loop_footer_branch
          %336 = sbr.rel target = $region50
        $region55: #{tpu_custom_call.1} parent=31 // loop_exit
          _
        // Predicated region
        $region56: #{tpu_custom_call.1} parent=31 // pred_check
          %p1270 = pneg %p312
        $region57: #{tpu_custom_call.1} parent=31 // pred_check_branch
          %1272 = sbr.rel (%p1270) target = $region59
        $region58: #{tpu_custom_call.1} parent=31 // pred_region
          %v1273 = vld [vmem:[#allocation3] sm:$0x3]
          %v1274 = vld [vmem:[#allocation3 + $0x2] sm:$0x3]
          %v1275 = vld [vmem:[#allocation3 + $0x4] sm:$0x3]
          %v1276 = vld [vmem:[#allocation3 + $0x6] sm:$0x3]
          %v1277 = vrcp.pop %v1273
          %v1278 = vrcp.pop %v1274
          %v1279 = vrcp.pop %v1275
          %v1280 = vrcp.pop %v1276
          %v1281 = vld [vmem:[#allocation4] sm:$0xff]
          %v1282 = vld [vmem:[#allocation4 + $0x8] sm:$0xff]
          %v1283 = vld [vmem:[#allocation4 + $0x10] sm:$0xff]
          %v1284 = vld [vmem:[#allocation4 + $0x18] sm:$0xff]
          %v1285 = vld [vmem:[#allocation4 + $0x20] sm:$0xff]
          %v1286 = vld [vmem:[#allocation4 + $0x28] sm:$0xff]
          %v1287 = vld [vmem:[#allocation4 + $0x30] sm:$0xff]
          %v1288 = vld [vmem:[#allocation4 + $0x38] sm:$0xff]
          %v1293 = vlaneseq
          %v1294 = vshrl.u32 %v1293, 7
          %v1295 = vsub.s32 0, %v1294
          %v1296 = vrot.slane %v1277, %v1295
          %v1297 = vlaneseq
          %v1298 = vshrl.u32 %v1297, 7
          %v1299 = vsub.s32 1, %v1298
          %v1300 = vrot.slane %v1277, %v1299
          %v1301 = vlaneseq
          %v1302 = vshrl.u32 %v1301, 7
          %v1303 = vsub.s32 0, %v1302
          %v1304 = vrot.slane %v1278, %v1303
          %v1305 = vlaneseq
          %v1306 = vshrl.u32 %v1305, 7
          %v1307 = vsub.s32 1, %v1306
          %v1308 = vrot.slane %v1278, %v1307
          %v1309 = vlaneseq
          %v1310 = vshrl.u32 %v1309, 7
          %v1311 = vsub.s32 0, %v1310
          %v1312 = vrot.slane %v1279, %v1311
          %v1313 = vlaneseq
          %v1314 = vshrl.u32 %v1313, 7
          %v1315 = vsub.s32 1, %v1314
          %v1316 = vrot.slane %v1279, %v1315
          %v1317 = vlaneseq
          %v1318 = vshrl.u32 %v1317, 7
          %v1319 = vsub.s32 0, %v1318
          %v1320 = vrot.slane %v1280, %v1319
          %v1321 = vlaneseq
          %v1322 = vshrl.u32 %v1321, 7
          %v1323 = vsub.s32 1, %v1322
          %v1324 = vrot.slane %v1280, %v1323
          %v1333 = vmul.f32 %v1281, %v1296
          %v1334 = vmul.f32 %v1282, %v1300
          %v1335 = vmul.f32 %v1283, %v1304
          %v1336 = vmul.f32 %v1284, %v1308
          %v1337 = vmul.f32 %v1285, %v1312
          %v1338 = vmul.f32 %v1286, %v1316
          %v1339 = vmul.f32 %v1287, %v1320
          %v1340 = vmul.f32 %v1288, %v1324
          %1341 = vst [vmem:[%s303] sm:$0xff] %v1333
          %1342 = vst [vmem:[%s303 + $0x8] sm:$0xff] %v1334
          %1343 = vst [vmem:[%s303 + $0x10] sm:$0xff] %v1335
          %1344 = vst [vmem:[%s303 + $0x18] sm:$0xff] %v1336
          %1345 = vst [vmem:[%s303 + $0x20] sm:$0xff] %v1337
          %1346 = vst [vmem:[%s303 + $0x28] sm:$0xff] %v1338
          %1347 = vst [vmem:[%s303 + $0x30] sm:$0xff] %v1339
          %1348 = vst [vmem:[%s303 + $0x38] sm:$0xff] %v1340
        $region59: #{tpu_custom_call.1} parent=31 // pred_fallthru
          _
        %s1349 = sand.u32 %s136, 1
        %s1350 = scalar_lea.sflag [#allocation7], %s1349
        %s1351 = sand.u32 %s136, 1
        %s1352 = smul.addr %s1351, 64
        %s1353 = scalar_lea.vmem [#allocation11], %s1352
        // Predicated region
        $region60: #{tpu_custom_call.1} parent=31 // pred_check
          %p1354 = pneg %p146
        $region61: #{tpu_custom_call.1} parent=31 // pred_check_branch
          %1356 = sbr.rel (%p1354) target = $region63
        $region62: #{tpu_custom_call.1} parent=31 // pred_region
          %s1357 = smul.u32 4, %s28
          %s1358 = smul.u32 2, %s29
          %s1360 = ssub.s32 1024, 1024
          %1361 = vsyncadd %s1350, %s1360
          %s1362 = smul.addr %s1357, 2
          %s1363 = sadd.s32 %s1358, %s1362
          %s1364 = smul.addr %s1363, 128
          %s1365 = scalar_lea.hbm %s3, %s1364
          %s1366 = sshll.u32 %s1353, 4
          %s1367 = int_to_ptr.vmem [resolvable:$true] %s1366
          %1372 = dma.vmem_to_hbm [thread:$0]  %s1367, 1024, %s1365, %s1350, 256, 256, 16
        $region63: #{tpu_custom_call.1} parent=31 // pred_fallthru
          _
      $region32: #{tpu_custom_call.1} parent=5 // pred_fallthru
        _
      %p1373 = scmp.le.s32.totalorder 2, %s18
      // Predicated region
      $region64: #{tpu_custom_call.1} parent=5 // pred_check
        %p1374 = pneg %p1373
      $region65: #{tpu_custom_call.1} parent=5 // pred_check_branch
        %1376 = sbr.rel (%p1374) target = $region67
      $region66: #{tpu_custom_call.1} parent=5 // pred_region
        %s1377 = ssub.s32 %s18, 2
        // Predicated region
        $region68: #{tpu_custom_call.1} parent=66 // pred_check
          %p1378 = pneg %p152
        $region69: #{tpu_custom_call.1} parent=66 // pred_check_branch
          %1380 = sbr.rel (%p1378) target = $region71
        $region70: #{tpu_custom_call.1} parent=66 // pred_region
          %s1381 = sand.u32 %s137, 1
          %s1382 = scalar_lea.sflag [#allocation7], %s1381
          %s1383 = sand.u32 %s137, 1
          %s1384 = smul.addr %s1383, 64
          %s1385 = scalar_lea.vmem [#allocation11], %s1384
          %1386 = dma.done %s1382, 1024
        $region71: #{tpu_custom_call.1} parent=66 // pred_fallthru
          _
      $region67: #{tpu_custom_call.1} parent=5 // pred_fallthru
        _
    $region6: #{tpu_custom_call.1} parent=1 // loop_footer
      %s22 = sadd.s32 1, %s18
    $region7: #{tpu_custom_call.1} parent=1 // loop_footer_branch
      %17 = sbr.rel target = $region3
    $region8: #{tpu_custom_call.1} parent=1 // loop_exit
      _
    %1387 = vsyncpa [#allocation6], 1
    %s1388 = scalar_lea.sflag [#allocation6], 1
    %1389 = vsyncpa %s1388, 1
    %1390 = vsyncpa [#allocation9], 1
    %s1391 = scalar_lea.sflag [#allocation9], 1
    %1392 = vsyncpa %s1391, 1
    %1393 = vsyncpa [#allocation7], 1
    %s1394 = scalar_lea.sflag [#allocation7], 1
    %1395 = vsyncpa %s1394, 1

</llo_original>
